<compile_context>
chip_gen: v7x
topology: tpu7x:2x2x1
jax: 0.10.0
libtpu: 0.0.40
codegen_flags: <defaults>
</compile_context>

<pallas_src>
import functools
import math

import jax
import jax.numpy as jnp
from jax.experimental import pallas as pl
from jax.experimental.pallas import tpu as pltpu


# ----------------------------- kernel helpers ------------------------------ #

def _layernorm(x, w, b, eps=1e-5):
    mu = jnp.mean(x, axis=-1, keepdims=True)
    var = jnp.mean((x - mu) ** 2, axis=-1, keepdims=True)
    return (x - mu) * jax.lax.rsqrt(var + eps) * w + b


def _gelu_exact(x):
    # PyTorch nn.GELU() default = exact erf formulation.
    return 0.5 * x * (1.0 + jax.lax.erf(x * (1.0 / math.sqrt(2.0))))


def make_block_kernel(num_heads, embed_dim):
    E = embed_dim
    H = num_heads
    dh = E // H
    scale = 1.0 / math.sqrt(dh)
    bf16 = jnp.bfloat16

    def kernel(x_ref, ln1_w, ln1_b, wqkv_t, bqkv, wo_t, bo,
               ln2_w, ln2_b, wfc_t, bfc, wproj_t, bproj, o_ref):
        x = x_ref[0]                                    # (L, E) f32, one batch element
        L = x.shape[0]

        # ------------------ attention branch (pre-LN) ------------------ #
        y = _layernorm(x, ln1_w[0], ln1_b[0])
        # fused QKV: one wide MXU matmul, f32 accumulation + f32 bias
        qkv = jnp.dot(y.astype(bf16), wqkv_t[...],
                      preferred_element_type=jnp.float32) + bqkv[0]   # (L, 3E)

        # heads batched: (H, L, dh) tensors, single batched matmuls
        q = jnp.swapaxes(qkv[:, 0 * E:1 * E].reshape(L, H, dh), 0, 1)
        k = jnp.swapaxes(qkv[:, 1 * E:2 * E].reshape(L, H, dh), 0, 1)
        v = jnp.swapaxes(qkv[:, 2 * E:3 * E].reshape(L, H, dh), 0, 1)

        s = jnp.einsum("hqd,hkd->hqk", q.astype(bf16), k.astype(bf16),
                       preferred_element_type=jnp.float32) * scale    # (H, L, L)
        s = s - jnp.max(s, axis=-1, keepdims=True)
        p = jnp.exp(s)                                                 # f32
        p = p * pl.reciprocal(jnp.sum(p, axis=-1, keepdims=True), approx=True)

        a = jnp.einsum("hqk,hkd->hqd", p.astype(bf16), v.astype(bf16),
                       preferred_element_type=jnp.float32)             # (H, L, dh)
        a = jnp.swapaxes(a, 0, 1).reshape(L, E)                        # (L, E)

        attn = jnp.dot(a.astype(bf16), wo_t[...],
                       preferred_element_type=jnp.float32) + bo[0]
        # attn dropout: identity at inference
        x1 = x + attn                                                  # f32 residual

        # --------------------------- MLP branch -------------------------- #
        y2 = _layernorm(x1, ln2_w[0], ln2_b[0])
        hidden = jnp.dot(y2.astype(bf16), wfc_t[...],
                         preferred_element_type=jnp.float32) + bfc[0]  # (L, 4E)
        hidden = _gelu_exact(hidden)                                    # f32
        mlp = jnp.dot(hidden.astype(bf16), wproj_t[...],
                      preferred_element_type=jnp.float32) + bproj[0]
        # resid dropout: identity at inference
        o_ref[0] = x1 + mlp

    return kernel


# ------------------------------- wrapper ------------------------------------ #

_PARAM_ORDER = ["ln1_w", "ln1_b", "wqkv_t", "bqkv", "wo_t", "bo",
                "ln2_w", "ln2_b", "wfc_t", "bfc", "wproj_t", "bproj"]


def vit_block_forward(x_nle, params, num_heads):
    """x_nle: (N, L, E) float32, batch-first. Seq-first callers transpose outside."""
    N, L, E = x_nle.shape
    args = [x_nle] + [params[k] for k in _PARAM_ORDER]

    in_specs = [pl.BlockSpec((1, L, E), lambda b: (b, 0, 0))]
    for name in _PARAM_ORDER:
        # all params are 2D; full-shape block, constant index map (kept resident)
        in_specs.append(pl.BlockSpec(params[name].shape, lambda b: (0, 0)))

    # advisory cost estimate for XLA scheduling around the custom call
    flops = N * (2 * L * E * (3 * E + E + 4 * E + 4 * E) + 4 * L * L * E)
    transcendentals = N * (num_heads * L * L + L * 4 * E + 2 * L)
    bytes_weights = sum(int(v.size) * int(v.dtype.itemsize) for v in params.values())
    bytes_accessed = 2 * N * L * E * 4 + bytes_weights
    cost = pl.CostEstimate(flops=int(flops),
                           transcendentals=int(transcendentals),
                           bytes_accessed=int(bytes_accessed))

    out = pl.pallas_call(
        make_block_kernel(num_heads, E),
        out_shape=jax.ShapeDtypeStruct((N, L, E), jnp.float32),
        grid_spec=pltpu.PrefetchScalarGridSpec(
            num_scalar_prefetch=0,
            grid=(N,),
            in_specs=in_specs,
            out_specs=pl.BlockSpec((1, L, E), lambda b: (b, 0, 0)),
        ),
        compiler_params=pltpu.CompilerParams(
            dimension_semantics=("parallel",),
            vmem_limit_bytes=48 * 1024 * 1024,
        ),
        cost_estimate=cost,
    )(*args)
    return out


# ----------------------------- parameter init -------------------------------- #

def init_params(key, embed_dim):
    E = embed_dim
    ks = jax.random.split(key, 6)
    s = 0.02

    in_proj_w = s * jax.random.normal(ks[0], (3 * E, E), jnp.float32)   # PyTorch (3E, E)
    in_proj_b = s * jax.random.normal(ks[1], (3 * E,), jnp.float32)
    out_proj_w = s * jax.random.normal(ks[2], (E, E), jnp.float32)
    out_proj_b = jnp.zeros((E,), jnp.float32)
    w_fc = s * jax.random.normal(ks[3], (4 * E, E), jnp.float32)
    b_fc = s * jax.random.normal(ks[4], (4 * E,), jnp.float32)
    w_proj = s * jax.random.normal(ks[5], (E, 4 * E), jnp.float32)
    b_proj = jnp.zeros((E,), jnp.float32)

    return {
        "ln1_w": jnp.ones((1, E), jnp.float32),
        "ln1_b": jnp.zeros((1, E), jnp.float32),
        # fused, pre-transposed QKV weight (PyTorch: y @ W_in.T); stored bf16 for MXU
        "wqkv_t": in_proj_w.T.astype(jnp.bfloat16),          # (E, 3E)
        "bqkv": in_proj_b.reshape(1, 3 * E),                  # f32
        "wo_t": out_proj_w.T.astype(jnp.bfloat16),            # (E, E)
        "bo": out_proj_b.reshape(1, E),
        "ln2_w": jnp.ones((1, E), jnp.float32),
        "ln2_b": jnp.zeros((1, E), jnp.float32),
        "wfc_t": w_fc.T.astype(jnp.bfloat16),                 # (E, 4E)
        "bfc": b_fc.reshape(1, 4 * E),
        "wproj_t": w_proj.T.astype(jnp.bfloat16),             # (4E, E)
        "bproj": b_proj.reshape(1, E),
    }


# ---------------------------- pure-JAX reference ------------------------------ #

def ref_forward(x_nle, p, num_heads):
    N, L, E = x_nle.shape
    dh = E // num_heads

    def ln(z, w, b, eps=1e-5):
        mu = jnp.mean(z, -1, keepdims=True)
        var = jnp.mean((z - mu) ** 2, -1, keepdims=True)
        return (z - mu) / jnp.sqrt(var + eps) * w + b

    wqkv = p["wqkv_t"].astype(jnp.float32)
    wo = p["wo_t"].astype(jnp.float32)
    wfc = p["wfc_t"].astype(jnp.float32)
    wproj = p["wproj_t"].astype(jnp.float32)

    y = ln(x_nle, p["ln1_w"][0], p["ln1_b"][0])
    qkv = y @ wqkv + p["bqkv"][0]                                 # (N, L, 3E)
    q, k, v = jnp.split(qkv, 3, axis=-1)
    qh = q.reshape(N, L, num_heads, dh)
    kh = k.reshape(N, L, num_heads, dh)
    vh = v.reshape(N, L, num_heads, dh)
    s = jnp.einsum("nqhd,nkhd->nhqk", qh, kh) / math.sqrt(dh)
    pa = jax.nn.softmax(s, axis=-1)
    a = jnp.einsum("nhqk,nkhd->nqhd", pa, vh).reshape(N, L, E)
    attn = a @ wo + p["bo"][0]
    x1 = x_nle + attn

    y2 = ln(x1, p["ln2_w"][0], p["ln2_b"][0])
    hid = jax.nn.gelu(y2 @ wfc + p["bfc"][0], approximate=False)
    mlp = hid @ wproj + p["bproj"][0]
    return x1 + mlp


# ----------------------------------- main ------------------------------------- #

if __name__ == "__main__":
    # Toy config consistent with ViTConfig: embed_dim=32, num_heads=4,
    # seq (tokens) = 8, batch = 2.  Batch-first (N, L, E) layout.
    N, L, E, H = 2, 8, 32, 4

    key = jax.random.PRNGKey(0)
    k_x, k_p = jax.random.split(key)
    x = jax.random.normal(k_x, (N, L, E), jnp.float32)
    params = init_params(k_p, E)

    fwd = jax.jit(functools.partial(vit_block_forward, num_heads=H))
    out = jax.block_until_ready(fwd(x, params))

    ref = ref_forward(x, params, H)
    assert out.shape == (N, L, E)
    max_err = float(jnp.max(jnp.abs(out - ref)))
    # bf16 matmul operands + approx reciprocal loosen tolerance vs the f32 reference.
    assert jnp.allclose(out, ref, rtol=2e-2, atol=2e-2), f"mismatch vs reference: {max_err}"

    # NOTE: the original PyTorch forward calls `self.attn(self.ln_1(x))` with a
    # single argument (which would raise in PyTorch); we implement the intended
    # self-attention semantics attn(y, y, y) and take the attention output.
    print("KERNEL_OK")
</pallas_src>

<mosaic_0001>
module attributes {stable_mosaic.version = 11 : i64} {
  func.func @kernel(%arg0: i32, %arg1: memref<1x8x32xf32, #tpu.memory_space<vmem>>, %arg2: memref<1x32xf32, #tpu.memory_space<vmem>>, %arg3: memref<1x32xf32, #tpu.memory_space<vmem>>, %arg4: memref<32x96xbf16, #tpu.memory_space<vmem>>, %arg5: memref<1x96xf32, #tpu.memory_space<vmem>>, %arg6: memref<32x32xbf16, #tpu.memory_space<vmem>>, %arg7: memref<1x32xf32, #tpu.memory_space<vmem>>, %arg8: memref<1x32xf32, #tpu.memory_space<vmem>>, %arg9: memref<1x32xf32, #tpu.memory_space<vmem>>, %arg10: memref<32x128xbf16, #tpu.memory_space<vmem>>, %arg11: memref<1x128xf32, #tpu.memory_space<vmem>>, %arg12: memref<128x32xbf16, #tpu.memory_space<vmem>>, %arg13: memref<1x32xf32, #tpu.memory_space<vmem>>, %arg14: memref<1x8x32xf32, #tpu.memory_space<vmem>>) attributes {dimension_semantics = [#tpu.dimension_semantics<parallel>], iteration_bounds = array<i64: 2>, scalar_prefetch = 0 : i64, scratch_operands = 0 : i64, tpu.core_type = #tpu.core_type<tc>, window_params = [{transform_indices = @transform_0, window_bounds = array<i64: 1, 8, 32>}, {pipeline_mode = #tpu.pipeline_mode<synchronous>, transform_indices = @transform_1, window_bounds = array<i64: 1, 32>}, {pipeline_mode = #tpu.pipeline_mode<synchronous>, transform_indices = @transform_2, window_bounds = array<i64: 1, 32>}, {pipeline_mode = #tpu.pipeline_mode<synchronous>, transform_indices = @transform_3, window_bounds = array<i64: 32, 96>}, {pipeline_mode = #tpu.pipeline_mode<synchronous>, transform_indices = @transform_4, window_bounds = array<i64: 1, 96>}, {pipeline_mode = #tpu.pipeline_mode<synchronous>, transform_indices = @transform_5, window_bounds = array<i64: 32, 32>}, {pipeline_mode = #tpu.pipeline_mode<synchronous>, transform_indices = @transform_6, window_bounds = array<i64: 1, 32>}, {pipeline_mode = #tpu.pipeline_mode<synchronous>, transform_indices = @transform_7, window_bounds = array<i64: 1, 32>}, {pipeline_mode = #tpu.pipeline_mode<synchronous>, transform_indices = @transform_8, window_bounds = array<i64: 1, 32>}, {pipeline_mode = #tpu.pipeline_mode<synchronous>, transform_indices = @transform_9, window_bounds = array<i64: 32, 128>}, {pipeline_mode = #tpu.pipeline_mode<synchronous>, transform_indices = @transform_10, window_bounds = array<i64: 1, 128>}, {pipeline_mode = #tpu.pipeline_mode<synchronous>, transform_indices = @transform_11, window_bounds = array<i64: 128, 32>}, {pipeline_mode = #tpu.pipeline_mode<synchronous>, transform_indices = @transform_12, window_bounds = array<i64: 1, 32>}, {transform_indices = @transform_13, window_bounds = array<i64: 1, 8, 32>}]} {
    %c0 = arith.constant 0 : index
    %c0_0 = arith.constant 0 : index
    %c0_1 = arith.constant 0 : index
    %0 = vector.load %arg1[%c0, %c0_0, %c0_1] : memref<1x8x32xf32, #tpu.memory_space<vmem>>, vector<1x8x32xf32>
    %1 = vector.shape_cast %0 : vector<1x8x32xf32> to vector<8x32xf32>
    %c0_2 = arith.constant 0 : index
    %c0_3 = arith.constant 0 : index
    %2 = vector.load %arg2[%c0_2, %c0_3] : memref<1x32xf32, #tpu.memory_space<vmem>>, vector<1x32xf32>
    %3 = vector.shape_cast %2 : vector<1x32xf32> to vector<32xf32>
    %c0_4 = arith.constant 0 : index
    %c0_5 = arith.constant 0 : index
    %4 = vector.load %arg3[%c0_4, %c0_5] : memref<1x32xf32, #tpu.memory_space<vmem>>, vector<1x32xf32>
    %5 = vector.shape_cast %4 : vector<1x32xf32> to vector<32xf32>
    %cst = arith.constant dense<0.000000e+00> : vector<8xf32>
    %6 = vector.multi_reduction <add>, %1, %cst [1] : vector<8x32xf32> to vector<8xf32>
    %7 = vector.shape_cast %6 : vector<8xf32> to vector<8x1xf32>
    %cst_6 = arith.constant 3.200000e+01 : f32
    %8 = vector.broadcast %cst_6 : f32 to vector<8x1xf32>
    %9 = arith.divf %7, %8 : vector<8x1xf32>
    %10 = vector.broadcast %9 : vector<8x1xf32> to vector<8x32xf32>
    %11 = arith.subf %1, %10 : vector<8x32xf32>
    %12 = arith.mulf %11, %11 : vector<8x32xf32>
    %cst_7 = arith.constant dense<0.000000e+00> : vector<8xf32>
    %13 = vector.multi_reduction <add>, %12, %cst_7 [1] : vector<8x32xf32> to vector<8xf32>
    %14 = vector.shape_cast %13 : vector<8xf32> to vector<8x1xf32>
    %cst_8 = arith.constant 3.200000e+01 : f32
    %15 = vector.broadcast %cst_8 : f32 to vector<8x1xf32>
    %16 = arith.divf %14, %15 : vector<8x1xf32>
    %17 = vector.broadcast %9 : vector<8x1xf32> to vector<8x32xf32>
    %18 = arith.subf %1, %17 : vector<8x32xf32>
    %cst_9 = arith.constant 9.99999974E-6 : f32
    %19 = vector.broadcast %cst_9 : f32 to vector<8x1xf32>
    %20 = arith.addf %16, %19 : vector<8x1xf32>
    %21 = math.rsqrt %20 : vector<8x1xf32>
    %22 = vector.broadcast %21 : vector<8x1xf32> to vector<8x32xf32>
    %23 = arith.mulf %18, %22 : vector<8x32xf32>
    %24 = vector.shape_cast %3 : vector<32xf32> to vector<1x32xf32>
    %25 = vector.broadcast %24 : vector<1x32xf32> to vector<8x32xf32>
    %26 = arith.mulf %23, %25 : vector<8x32xf32>
    %27 = vector.shape_cast %5 : vector<32xf32> to vector<1x32xf32>
    %28 = vector.broadcast %27 : vector<1x32xf32> to vector<8x32xf32>
    %29 = arith.addf %26, %28 : vector<8x32xf32>
    %30 = arith.truncf %29 : vector<8x32xf32> to vector<8x32xbf16>
    %c0_10 = arith.constant 0 : index
    %c0_11 = arith.constant 0 : index
    %31 = vector.load %arg4[%c0_10, %c0_11] : memref<32x96xbf16, #tpu.memory_space<vmem>>, vector<32x96xbf16>
    %cst_12 = arith.constant dense<0.000000e+00> : vector<8x96xf32>
    %32 = tpu.matmul %30, %31, %cst_12 {dimension_numbers = #tpu.dot_dimension_numbers<[1], [0], [0], [1], [0, 0, 1, 1], [], []>} : vector<8x32xbf16>, vector<32x96xbf16>, vector<8x96xf32> -> vector<8x96xf32>
    %c0_13 = arith.constant 0 : index
    %c0_14 = arith.constant 0 : index
    %33 = vector.load %arg5[%c0_13, %c0_14] : memref<1x96xf32, #tpu.memory_space<vmem>>, vector<1x96xf32>
    %34 = vector.shape_cast %33 : vector<1x96xf32> to vector<96xf32>
    %35 = vector.shape_cast %34 : vector<96xf32> to vector<1x96xf32>
    %36 = vector.broadcast %35 : vector<1x96xf32> to vector<8x96xf32>
    %37 = arith.addf %32, %36 : vector<8x96xf32>
    %38 = vector.extract_strided_slice %37 {offsets = [0, 0], sizes = [8, 32], strides = [1, 1]} : vector<8x96xf32> to vector<8x32xf32>
    %39 = vector.shape_cast %38 : vector<8x32xf32> to vector<8x4x8xf32>
    %40 = tpu.transpose %39, [1, 0, 2] : vector<8x4x8xf32> -> vector<4x8x8xf32>
    %41 = vector.extract_strided_slice %37 {offsets = [0, 32], sizes = [8, 32], strides = [1, 1]} : vector<8x96xf32> to vector<8x32xf32>
    %42 = vector.shape_cast %41 : vector<8x32xf32> to vector<8x4x8xf32>
    %43 = tpu.transpose %42, [1, 0, 2] : vector<8x4x8xf32> -> vector<4x8x8xf32>
    %44 = vector.extract_strided_slice %37 {offsets = [0, 64], sizes = [8, 32], strides = [1, 1]} : vector<8x96xf32> to vector<8x32xf32>
    %45 = vector.shape_cast %44 : vector<8x32xf32> to vector<8x4x8xf32>
    %46 = tpu.transpose %45, [1, 0, 2] : vector<8x4x8xf32> -> vector<4x8x8xf32>
    %47 = arith.truncf %40 : vector<4x8x8xf32> to vector<4x8x8xbf16>
    %48 = arith.truncf %43 : vector<4x8x8xf32> to vector<4x8x8xbf16>
    "tpu.trace_start"() <{level = 10 : i32, message = "hqd,hkd->hqk"}> : () -> ()
    %cst_15 = arith.constant dense<0.000000e+00> : vector<4x8x8xf32>
    %49 = tpu.matmul %47, %48, %cst_15 {dimension_numbers = #tpu.dot_dimension_numbers<[2], [2], [1], [1], [0, 0, 0, 1, 1, 1], [0], [0]>} : vector<4x8x8xbf16>, vector<4x8x8xbf16>, vector<4x8x8xf32> -> vector<4x8x8xf32>
    "tpu.trace_stop"() : () -> ()
    %cst_16 = arith.constant 0.353553385 : f32
    %50 = vector.broadcast %cst_16 : f32 to vector<4x8x8xf32>
    %51 = arith.mulf %49, %50 : vector<4x8x8xf32>
    %cst_17 = arith.constant dense<0xFF800000> : vector<4x8xf32>
    %52 = vector.multi_reduction <maximumf>, %51, %cst_17 [2] : vector<4x8x8xf32> to vector<4x8xf32>
    %53 = vector.shape_cast %52 : vector<4x8xf32> to vector<4x8x1xf32>
    %54 = vector.broadcast %53 : vector<4x8x1xf32> to vector<4x8x8xf32>
    %55 = arith.subf %51, %54 : vector<4x8x8xf32>
    %56 = math.exp %55 : vector<4x8x8xf32>
    %cst_18 = arith.constant dense<0.000000e+00> : vector<4x8xf32>
    %57 = vector.multi_reduction <add>, %56, %cst_18 [2] : vector<4x8x8xf32> to vector<4x8xf32>
    %58 = vector.shape_cast %57 : vector<4x8xf32> to vector<4x8x1xf32>
    %59 = tpu.reciprocal %58 {approx = true} : vector<4x8x1xf32> -> vector<4x8x1xf32>
    %60 = vector.broadcast %59 : vector<4x8x1xf32> to vector<4x8x8xf32>
    %61 = arith.mulf %56, %60 : vector<4x8x8xf32>
    %62 = arith.truncf %61 : vector<4x8x8xf32> to vector<4x8x8xbf16>
    %63 = arith.truncf %46 : vector<4x8x8xf32> to vector<4x8x8xbf16>
    "tpu.trace_start"() <{level = 10 : i32, message = "hqk,hkd->hqd"}> : () -> ()
    %cst_19 = arith.constant dense<0.000000e+00> : vector<4x8x8xf32>
    %64 = tpu.matmul %62, %63, %cst_19 {dimension_numbers = #tpu.dot_dimension_numbers<[2], [1], [1], [2], [0, 0, 0, 1, 1, 2], [0], [0]>} : vector<4x8x8xbf16>, vector<4x8x8xbf16>, vector<4x8x8xf32> -> vector<4x8x8xf32>
    "tpu.trace_stop"() : () -> ()
    %65 = tpu.transpose %64, [1, 0, 2] : vector<4x8x8xf32> -> vector<8x4x8xf32>
    %66 = vector.shape_cast %65 : vector<8x4x8xf32> to vector<8x32xf32>
    %67 = arith.truncf %66 : vector<8x32xf32> to vector<8x32xbf16>
    %c0_20 = arith.constant 0 : index
    %c0_21 = arith.constant 0 : index
    %68 = vector.load %arg6[%c0_20, %c0_21] : memref<32x32xbf16, #tpu.memory_space<vmem>>, vector<32x32xbf16>
    %cst_22 = arith.constant dense<0.000000e+00> : vector<8x32xf32>
    %69 = tpu.matmul %67, %68, %cst_22 {dimension_numbers = #tpu.dot_dimension_numbers<[1], [0], [0], [1], [0, 0, 1, 1], [], []>} : vector<8x32xbf16>, vector<32x32xbf16>, vector<8x32xf32> -> vector<8x32xf32>
    %c0_23 = arith.constant 0 : index
    %c0_24 = arith.constant 0 : index
    %70 = vector.load %arg7[%c0_23, %c0_24] : memref<1x32xf32, #tpu.memory_space<vmem>>, vector<1x32xf32>
    %71 = vector.shape_cast %70 : vector<1x32xf32> to vector<32xf32>
    %72 = vector.shape_cast %71 : vector<32xf32> to vector<1x32xf32>
    %73 = vector.broadcast %72 : vector<1x32xf32> to vector<8x32xf32>
    %74 = arith.addf %69, %73 : vector<8x32xf32>
    %75 = arith.addf %1, %74 : vector<8x32xf32>
    %c0_25 = arith.constant 0 : index
    %c0_26 = arith.constant 0 : index
    %76 = vector.load %arg8[%c0_25, %c0_26] : memref<1x32xf32, #tpu.memory_space<vmem>>, vector<1x32xf32>
    %77 = vector.shape_cast %76 : vector<1x32xf32> to vector<32xf32>
    %c0_27 = arith.constant 0 : index
    %c0_28 = arith.constant 0 : index
    %78 = vector.load %arg9[%c0_27, %c0_28] : memref<1x32xf32, #tpu.memory_space<vmem>>, vector<1x32xf32>
    %79 = vector.shape_cast %78 : vector<1x32xf32> to vector<32xf32>
    %cst_29 = arith.constant dense<0.000000e+00> : vector<8xf32>
    %80 = vector.multi_reduction <add>, %75, %cst_29 [1] : vector<8x32xf32> to vector<8xf32>
    %81 = vector.shape_cast %80 : vector<8xf32> to vector<8x1xf32>
    %cst_30 = arith.constant 3.200000e+01 : f32
    %82 = vector.broadcast %cst_30 : f32 to vector<8x1xf32>
    %83 = arith.divf %81, %82 : vector<8x1xf32>
    %84 = vector.broadcast %83 : vector<8x1xf32> to vector<8x32xf32>
    %85 = arith.subf %75, %84 : vector<8x32xf32>
    %86 = arith.mulf %85, %85 : vector<8x32xf32>
    %cst_31 = arith.constant dense<0.000000e+00> : vector<8xf32>
    %87 = vector.multi_reduction <add>, %86, %cst_31 [1] : vector<8x32xf32> to vector<8xf32>
    %88 = vector.shape_cast %87 : vector<8xf32> to vector<8x1xf32>
    %cst_32 = arith.constant 3.200000e+01 : f32
    %89 = vector.broadcast %cst_32 : f32 to vector<8x1xf32>
    %90 = arith.divf %88, %89 : vector<8x1xf32>
    %91 = vector.broadcast %83 : vector<8x1xf32> to vector<8x32xf32>
    %92 = arith.subf %75, %91 : vector<8x32xf32>
    %cst_33 = arith.constant 9.99999974E-6 : f32
    %93 = vector.broadcast %cst_33 : f32 to vector<8x1xf32>
    %94 = arith.addf %90, %93 : vector<8x1xf32>
    %95 = math.rsqrt %94 : vector<8x1xf32>
    %96 = vector.broadcast %95 : vector<8x1xf32> to vector<8x32xf32>
    %97 = arith.mulf %92, %96 : vector<8x32xf32>
    %98 = vector.shape_cast %77 : vector<32xf32> to vector<1x32xf32>
    %99 = vector.broadcast %98 : vector<1x32xf32> to vector<8x32xf32>
    %100 = arith.mulf %97, %99 : vector<8x32xf32>
    %101 = vector.shape_cast %79 : vector<32xf32> to vector<1x32xf32>
    %102 = vector.broadcast %101 : vector<1x32xf32> to vector<8x32xf32>
    %103 = arith.addf %100, %102 : vector<8x32xf32>
    %104 = arith.truncf %103 : vector<8x32xf32> to vector<8x32xbf16>
    %c0_34 = arith.constant 0 : index
    %c0_35 = arith.constant 0 : index
    %105 = vector.load %arg10[%c0_34, %c0_35] : memref<32x128xbf16, #tpu.memory_space<vmem>>, vector<32x128xbf16>
    %cst_36 = arith.constant dense<0.000000e+00> : vector<8x128xf32>
    %106 = tpu.matmul %104, %105, %cst_36 {dimension_numbers = #tpu.dot_dimension_numbers<[1], [0], [0], [1], [0, 0, 1, 1], [], []>} : vector<8x32xbf16>, vector<32x128xbf16>, vector<8x128xf32> -> vector<8x128xf32>
    %c0_37 = arith.constant 0 : index
    %c0_38 = arith.constant 0 : index
    %107 = vector.load %arg11[%c0_37, %c0_38] : memref<1x128xf32, #tpu.memory_space<vmem>>, vector<1x128xf32>
    %108 = vector.shape_cast %107 : vector<1x128xf32> to vector<128xf32>
    %109 = vector.shape_cast %108 : vector<128xf32> to vector<1x128xf32>
    %110 = vector.broadcast %109 : vector<1x128xf32> to vector<8x128xf32>
    %111 = arith.addf %106, %110 : vector<8x128xf32>
    %cst_39 = arith.constant 5.000000e-01 : f32
    %112 = vector.broadcast %cst_39 : f32 to vector<8x128xf32>
    %113 = arith.mulf %112, %111 : vector<8x128xf32>
    %cst_40 = arith.constant 0.707106769 : f32
    %114 = vector.broadcast %cst_40 : f32 to vector<8x128xf32>
    %115 = arith.mulf %111, %114 : vector<8x128xf32>
    %116 = math.erf %115 : vector<8x128xf32>
    %cst_41 = arith.constant 1.000000e+00 : f32
    %117 = vector.broadcast %cst_41 : f32 to vector<8x128xf32>
    %118 = arith.addf %117, %116 : vector<8x128xf32>
    %119 = arith.mulf %113, %118 : vector<8x128xf32>
    %120 = arith.truncf %119 : vector<8x128xf32> to vector<8x128xbf16>
    %c0_42 = arith.constant 0 : index
    %c0_43 = arith.constant 0 : index
    %121 = vector.load %arg12[%c0_42, %c0_43] : memref<128x32xbf16, #tpu.memory_space<vmem>>, vector<128x32xbf16>
    %cst_44 = arith.constant dense<0.000000e+00> : vector<8x32xf32>
    %122 = tpu.matmul %120, %121, %cst_44 {dimension_numbers = #tpu.dot_dimension_numbers<[1], [0], [0], [1], [0, 0, 1, 1], [], []>} : vector<8x128xbf16>, vector<128x32xbf16>, vector<8x32xf32> -> vector<8x32xf32>
    %c0_45 = arith.constant 0 : index
    %c0_46 = arith.constant 0 : index
    %123 = vector.load %arg13[%c0_45, %c0_46] : memref<1x32xf32, #tpu.memory_space<vmem>>, vector<1x32xf32>
    %124 = vector.shape_cast %123 : vector<1x32xf32> to vector<32xf32>
    %125 = vector.shape_cast %124 : vector<32xf32> to vector<1x32xf32>
    %126 = vector.broadcast %125 : vector<1x32xf32> to vector<8x32xf32>
    %127 = arith.addf %122, %126 : vector<8x32xf32>
    %128 = arith.addf %75, %127 : vector<8x32xf32>
    %c0_47 = arith.constant 0 : index
    %c0_48 = arith.constant 0 : index
    %c0_49 = arith.constant 0 : index
    %129 = vector.load %arg14[%c0_47, %c0_48, %c0_49] : memref<1x8x32xf32, #tpu.memory_space<vmem>>, vector<1x8x32xf32>
    %130 = vector.shape_cast %129 : vector<1x8x32xf32> to vector<8x32xf32>
    %131 = vector.shape_cast %128 : vector<8x32xf32> to vector<1x8x32xf32>
    tpu.vector_store %arg14[%c0_47, %c0_48, %c0_49], %131 {strides = array<i32>} : memref<1x8x32xf32, #tpu.memory_space<vmem>>, vector<1x8x32xf32>,
    return
  }
  func.func @transform_0(%arg0: i32) -> (i32, i32, i32) {
    %c0_i32 = arith.constant 0 : i32
    %c0_i32_0 = arith.constant 0 : i32
    %c0_i32_1 = arith.constant 0 : i32
    return %arg0, %c0_i32, %c0_i32_0 : i32, i32, i32
  }
  func.func @transform_1(%arg0: i32) -> (i32, i32) {
    %c0_i32 = arith.constant 0 : i32
    %c0_i32_0 = arith.constant 0 : i32
    %c0_i32_1 = arith.constant 0 : i32
    return %c0_i32, %c0_i32_0 : i32, i32
  }
  func.func @transform_2(%arg0: i32) -> (i32, i32) {
    %c0_i32 = arith.constant 0 : i32
    %c0_i32_0 = arith.constant 0 : i32
    %c0_i32_1 = arith.constant 0 : i32
    return %c0_i32, %c0_i32_0 : i32, i32
  }
  func.func @transform_3(%arg0: i32) -> (i32, i32) {
    %c0_i32 = arith.constant 0 : i32
    %c0_i32_0 = arith.constant 0 : i32
    %c0_i32_1 = arith.constant 0 : i32
    return %c0_i32, %c0_i32_0 : i32, i32
  }
  func.func @transform_4(%arg0: i32) -> (i32, i32) {
    %c0_i32 = arith.constant 0 : i32
    %c0_i32_0 = arith.constant 0 : i32
    %c0_i32_1 = arith.constant 0 : i32
    return %c0_i32, %c0_i32_0 : i32, i32
  }
  func.func @transform_5(%arg0: i32) -> (i32, i32) {
    %c0_i32 = arith.constant 0 : i32
    %c0_i32_0 = arith.constant 0 : i32
    %c0_i32_1 = arith.constant 0 : i32
    return %c0_i32, %c0_i32_0 : i32, i32
  }
  func.func @transform_6(%arg0: i32) -> (i32, i32) {
    %c0_i32 = arith.constant 0 : i32
    %c0_i32_0 = arith.constant 0 : i32
    %c0_i32_1 = arith.constant 0 : i32
    return %c0_i32, %c0_i32_0 : i32, i32
  }
  func.func @transform_7(%arg0: i32) -> (i32, i32) {
    %c0_i32 = arith.constant 0 : i32
    %c0_i32_0 = arith.constant 0 : i32
    %c0_i32_1 = arith.constant 0 : i32
    return %c0_i32, %c0_i32_0 : i32, i32
  }
  func.func @transform_8(%arg0: i32) -> (i32, i32) {
    %c0_i32 = arith.constant 0 : i32
    %c0_i32_0 = arith.constant 0 : i32
    %c0_i32_1 = arith.constant 0 : i32
    return %c0_i32, %c0_i32_0 : i32, i32
  }
  func.func @transform_9(%arg0: i32) -> (i32, i32) {
    %c0_i32 = arith.constant 0 : i32
    %c0_i32_0 = arith.constant 0 : i32
    %c0_i32_1 = arith.constant 0 : i32
    return %c0_i32, %c0_i32_0 : i32, i32
  }
  func.func @transform_10(%arg0: i32) -> (i32, i32) {
    %c0_i32 = arith.constant 0 : i32
    %c0_i32_0 = arith.constant 0 : i32
    %c0_i32_1 = arith.constant 0 : i32
    return %c0_i32, %c0_i32_0 : i32, i32
  }
  func.func @transform_11(%arg0: i32) -> (i32, i32) {
    %c0_i32 = arith.constant 0 : i32
    %c0_i32_0 = arith.constant 0 : i32
    %c0_i32_1 = arith.constant 0 : i32
    return %c0_i32, %c0_i32_0 : i32, i32
  }
  func.func @transform_12(%arg0: i32) -> (i32, i32) {
    %c0_i32 = arith.constant 0 : i32
    %c0_i32_0 = arith.constant 0 : i32
    %c0_i32_1 = arith.constant 0 : i32
    return %c0_i32, %c0_i32_0 : i32, i32
  }
  func.func @transform_13(%arg0: i32) -> (i32, i32, i32) {
    %c0_i32 = arith.constant 0 : i32
    %c0_i32_0 = arith.constant 0 : i32
    %c0_i32_1 = arith.constant 0 : i32
    return %arg0, %c0_i32, %c0_i32_0 : i32, i32, i32
  }
}

</mosaic_0001>

<llo_original>
// kernel: vit_block_forward.1
$region0: #{vit_block_forward.1}
  #allocation0 [shape = 'u32[]', space=smem, size = 0x4, offset = 0x4, fixed_abs, tag = 'smem constant byte address 0x4 - core index']
  #allocation1 [shape = 'u32[144,128]{1,0:T(1,128)}', space=vmem, size = 0x12000, scoped, tag = 'internal scratch']
  %s0 = inlined_call_operand.vmem [shape: f32[2,8,32], index: 0, kind: input, shape index: {}]
  %s1 = inlined_call_operand.vmem [shape: f32[1,32], index: 1, kind: input, shape index: {}]
  %s2 = inlined_call_operand.vmem [shape: f32[1,32], index: 2, kind: input, shape index: {}]
  %s3 = inlined_call_operand.vmem [shape: bf16[32,96], index: 3, kind: input, shape index: {}]
  %s4 = inlined_call_operand.vmem [shape: f32[1,96], index: 4, kind: input, shape index: {}]
  %s5 = inlined_call_operand.vmem [shape: bf16[32,32], index: 5, kind: input, shape index: {}]
  %s6 = inlined_call_operand.vmem [shape: f32[1,32], index: 6, kind: input, shape index: {}]
  %s7 = inlined_call_operand.vmem [shape: f32[1,32], index: 7, kind: input, shape index: {}]
  %s8 = inlined_call_operand.vmem [shape: f32[1,32], index: 8, kind: input, shape index: {}]
  %s9 = inlined_call_operand.vmem [shape: bf16[32,128], index: 9, kind: input, shape index: {}]
  %s10 = inlined_call_operand.vmem [shape: f32[1,128], index: 10, kind: input, shape index: {}]
  %s11 = inlined_call_operand.vmem [shape: bf16[128,32], index: 11, kind: input, shape index: {}]
  %s12 = inlined_call_operand.vmem [shape: f32[1,32], index: 12, kind: input, shape index: {}]
  %s13 = inlined_call_operand.hbm [shape: f32[2,8,32], index: 13, kind: output, shape index: {}]
  %s14 = sld [smem:[#allocation0]]
  $region85: #{vit_block_forward.1} parent=0
    _
  %s16 = ssub.s32 1, %s14
  %s17 = scalar_select 0, %s16, %s14
  $region1: #{vit_block_forward.1} parent=0
    #allocation2 [shape = 'u8[8192]{0}', space=vmem, size = 0x2000, scoped, tag = 'output window, operand 0']
    #allocation3 [shape = 's32[2]{0}', space=sflag, size = 0x8, scoped, tag = 'scoped memory for vit_block_forward.1']
    %18 = vsyncpa [#allocation3], 0
    %s19 = scalar_lea.sflag [#allocation3], 1
    %20 = vsyncpa %s19, 0
    loop: start=0, step=1, limit=4
    $region2: #{vit_block_forward.1} parent=1 // loop_pre_header
      _
    $region3: #{vit_block_forward.1} parent=1 // loop_header
      %s22 = sphi 0, %s26
      %p23 = scmp.ge.s32.totalorder %s22, 4
      %s32 = sphi 0, %s34
      %s35 = sphi 0, %s32
      %s36 = sphi 0, %s35
      %s52 = sphi 0, %s36
      %s56 = sphi 0, %s56
      %s58 = sphi 0, %s56
      %s59 = sphi 0, %s58
      %s73 = sphi 0, %s59
      %s77 = sphi 0, %s77
      %s79 = sphi 0, %s77
      %s80 = sphi 0, %s79
      %s94 = sphi 0, %s80
      %s98 = sphi 0, %s98
      %s100 = sphi 0, %s98
      %s101 = sphi 0, %s100
      %s115 = sphi 0, %s101
      %s119 = sphi 0, %s119
      %s121 = sphi 0, %s119
      %s122 = sphi 0, %s121
      %s136 = sphi 0, %s122
      %s140 = sphi 0, %s140
      %s142 = sphi 0, %s140
      %s143 = sphi 0, %s142
      %s157 = sphi 0, %s143
      %s161 = sphi 0, %s161
      %s163 = sphi 0, %s161
      %s164 = sphi 0, %s163
      %s178 = sphi 0, %s164
      %s182 = sphi 0, %s182
      %s184 = sphi 0, %s182
      %s185 = sphi 0, %s184
      %s199 = sphi 0, %s185
      %s203 = sphi 0, %s203
      %s205 = sphi 0, %s203
      %s206 = sphi 0, %s205
      %s220 = sphi 0, %s206
      %s224 = sphi 0, %s224
      %s226 = sphi 0, %s224
      %s227 = sphi 0, %s226
      %s241 = sphi 0, %s227
      %s245 = sphi 0, %s245
      %s247 = sphi 0, %s245
      %s248 = sphi 0, %s247
      %s262 = sphi 0, %s248
      %s266 = sphi 0, %s266
      %s268 = sphi 0, %s266
      %s269 = sphi 0, %s268
      %s283 = sphi 0, %s269
      %s287 = sphi 0, %s287
      %s289 = sphi 0, %s287
      %s290 = sphi 0, %s289
      %s304 = sphi 0, %s290
      %s310 = sphi 0, %s312
      %s313 = sphi 0, %s310
      %s314 = sphi 0, %s313
      %s330 = sphi 0, %s314
    $region4: #{vit_block_forward.1} parent=1 // loop_header_branch
      %25 = sbr.rel (%p23) target = $region8
    $region5: #{vit_block_forward.1} parent=1 // loop_body
      %s27 = ssub.s32 %s22, 1
      %s28 = ssub.s32 %s22, 2
      %s29 = sadd.s32 %s22, 1
      %s30 = ssub.s32 %s22, %s29
      %p31 = scmp.eq.s32.totalorder %s30, 0
      %s33 = sadd.s32 %s32, 1
      %s34 = scalar_select %p31, %s32, %s33
      %p37 = pneg %p31
      %p38 = scmp.eq.s32.totalorder %s22, 1
      %p39 = por %p37, %p38
      %p40 = scmp.ne.s32.totalorder %s32, %s35
      %p41 = scmp.eq.s32.totalorder %s22, 0
      %p42 = por %p40, %p41
      %p43 = scmp.ne.s32.totalorder %s32, %s35
      %p44 = scmp.eq.s32.totalorder %s27, 1
      %p45 = por %p43, %p44
      %p46 = scmp.ne.s32.totalorder %s35, %s36
      %p47 = scmp.eq.s32.totalorder %s27, 0
      %p48 = por %p46, %p47
      %p49 = scmp.ne.s32.totalorder %s35, %s36
      %p50 = scmp.eq.s32.totalorder %s28, 1
      %p51 = por %p49, %p50
      %p53 = scmp.ne.s32.totalorder %s36, %s52
      %p54 = scmp.eq.s32.totalorder %s28, 0
      %p55 = por %p53, %p54
      %s57 = sadd.s32 %s56, 1
      %p60 = scmp.eq.s32.totalorder %s22, 1
      %p61 = scmp.ne.s32.totalorder %s56, %s58
      %p62 = scmp.eq.s32.totalorder %s22, 0
      %p63 = por %p61, %p62
      %p64 = scmp.ne.s32.totalorder %s56, %s58
      %p65 = scmp.eq.s32.totalorder %s27, 1
      %p66 = por %p64, %p65
      %p67 = scmp.ne.s32.totalorder %s58, %s59
      %p68 = scmp.eq.s32.totalorder %s27, 0
      %p69 = por %p67, %p68
      %p70 = scmp.ne.s32.totalorder %s58, %s59
      %p71 = scmp.eq.s32.totalorder %s28, 1
      %p72 = por %p70, %p71
      %p74 = scmp.ne.s32.totalorder %s59, %s73
      %p75 = scmp.eq.s32.totalorder %s28, 0
      %p76 = por %p74, %p75
      %s78 = sadd.s32 %s77, 1
      %p81 = scmp.eq.s32.totalorder %s22, 1
      %p82 = scmp.ne.s32.totalorder %s77, %s79
      %p83 = scmp.eq.s32.totalorder %s22, 0
      %p84 = por %p82, %p83
      %p85 = scmp.ne.s32.totalorder %s77, %s79
      %p86 = scmp.eq.s32.totalorder %s27, 1
      %p87 = por %p85, %p86
      %p88 = scmp.ne.s32.totalorder %s79, %s80
      %p89 = scmp.eq.s32.totalorder %s27, 0
      %p90 = por %p88, %p89
      %p91 = scmp.ne.s32.totalorder %s79, %s80
      %p92 = scmp.eq.s32.totalorder %s28, 1
      %p93 = por %p91, %p92
      %p95 = scmp.ne.s32.totalorder %s80, %s94
      %p96 = scmp.eq.s32.totalorder %s28, 0
      %p97 = por %p95, %p96
      %s99 = sadd.s32 %s98, 1
      %p102 = scmp.eq.s32.totalorder %s22, 1
      %p103 = scmp.ne.s32.totalorder %s98, %s100
      %p104 = scmp.eq.s32.totalorder %s22, 0
      %p105 = por %p103, %p104
      %p106 = scmp.ne.s32.totalorder %s98, %s100
      %p107 = scmp.eq.s32.totalorder %s27, 1
      %p108 = por %p106, %p107
      %p109 = scmp.ne.s32.totalorder %s100, %s101
      %p110 = scmp.eq.s32.totalorder %s27, 0
      %p111 = por %p109, %p110
      %p112 = scmp.ne.s32.totalorder %s100, %s101
      %p113 = scmp.eq.s32.totalorder %s28, 1
      %p114 = por %p112, %p113
      %p116 = scmp.ne.s32.totalorder %s101, %s115
      %p117 = scmp.eq.s32.totalorder %s28, 0
      %p118 = por %p116, %p117
      %s120 = sadd.s32 %s119, 1
      %p123 = scmp.eq.s32.totalorder %s22, 1
      %p124 = scmp.ne.s32.totalorder %s119, %s121
      %p125 = scmp.eq.s32.totalorder %s22, 0
      %p126 = por %p124, %p125
      %p127 = scmp.ne.s32.totalorder %s119, %s121
      %p128 = scmp.eq.s32.totalorder %s27, 1
      %p129 = por %p127, %p128
      %p130 = scmp.ne.s32.totalorder %s121, %s122
      %p131 = scmp.eq.s32.totalorder %s27, 0
      %p132 = por %p130, %p131
      %p133 = scmp.ne.s32.totalorder %s121, %s122
      %p134 = scmp.eq.s32.totalorder %s28, 1
      %p135 = por %p133, %p134
      %p137 = scmp.ne.s32.totalorder %s122, %s136
      %p138 = scmp.eq.s32.totalorder %s28, 0
      %p139 = por %p137, %p138
      %s141 = sadd.s32 %s140, 1
      %p144 = scmp.eq.s32.totalorder %s22, 1
      %p145 = scmp.ne.s32.totalorder %s140, %s142
      %p146 = scmp.eq.s32.totalorder %s22, 0
      %p147 = por %p145, %p146
      %p148 = scmp.ne.s32.totalorder %s140, %s142
      %p149 = scmp.eq.s32.totalorder %s27, 1
      %p150 = por %p148, %p149
      %p151 = scmp.ne.s32.totalorder %s142, %s143
      %p152 = scmp.eq.s32.totalorder %s27, 0
      %p153 = por %p151, %p152
      %p154 = scmp.ne.s32.totalorder %s142, %s143
      %p155 = scmp.eq.s32.totalorder %s28, 1
      %p156 = por %p154, %p155
      %p158 = scmp.ne.s32.totalorder %s143, %s157
      %p159 = scmp.eq.s32.totalorder %s28, 0
      %p160 = por %p158, %p159
      %s162 = sadd.s32 %s161, 1
      %p165 = scmp.eq.s32.totalorder %s22, 1
      %p166 = scmp.ne.s32.totalorder %s161, %s163
      %p167 = scmp.eq.s32.totalorder %s22, 0
      %p168 = por %p166, %p167
      %p169 = scmp.ne.s32.totalorder %s161, %s163
      %p170 = scmp.eq.s32.totalorder %s27, 1
      %p171 = por %p169, %p170
      %p172 = scmp.ne.s32.totalorder %s163, %s164
      %p173 = scmp.eq.s32.totalorder %s27, 0
      %p174 = por %p172, %p173
      %p175 = scmp.ne.s32.totalorder %s163, %s164
      %p176 = scmp.eq.s32.totalorder %s28, 1
      %p177 = por %p175, %p176
      %p179 = scmp.ne.s32.totalorder %s164, %s178
      %p180 = scmp.eq.s32.totalorder %s28, 0
      %p181 = por %p179, %p180
      %s183 = sadd.s32 %s182, 1
      %p186 = scmp.eq.s32.totalorder %s22, 1
      %p187 = scmp.ne.s32.totalorder %s182, %s184
      %p188 = scmp.eq.s32.totalorder %s22, 0
      %p189 = por %p187, %p188
      %p190 = scmp.ne.s32.totalorder %s182, %s184
      %p191 = scmp.eq.s32.totalorder %s27, 1
      %p192 = por %p190, %p191
      %p193 = scmp.ne.s32.totalorder %s184, %s185
      %p194 = scmp.eq.s32.totalorder %s27, 0
      %p195 = por %p193, %p194
      %p196 = scmp.ne.s32.totalorder %s184, %s185
      %p197 = scmp.eq.s32.totalorder %s28, 1
      %p198 = por %p196, %p197
      %p200 = scmp.ne.s32.totalorder %s185, %s199
      %p201 = scmp.eq.s32.totalorder %s28, 0
      %p202 = por %p200, %p201
      %s204 = sadd.s32 %s203, 1
      %p207 = scmp.eq.s32.totalorder %s22, 1
      %p208 = scmp.ne.s32.totalorder %s203, %s205
      %p209 = scmp.eq.s32.totalorder %s22, 0
      %p210 = por %p208, %p209
      %p211 = scmp.ne.s32.totalorder %s203, %s205
      %p212 = scmp.eq.s32.totalorder %s27, 1
      %p213 = por %p211, %p212
      %p214 = scmp.ne.s32.totalorder %s205, %s206
      %p215 = scmp.eq.s32.totalorder %s27, 0
      %p216 = por %p214, %p215
      %p217 = scmp.ne.s32.totalorder %s205, %s206
      %p218 = scmp.eq.s32.totalorder %s28, 1
      %p219 = por %p217, %p218
      %p221 = scmp.ne.s32.totalorder %s206, %s220
      %p222 = scmp.eq.s32.totalorder %s28, 0
      %p223 = por %p221, %p222
      %s225 = sadd.s32 %s224, 1
      %p228 = scmp.eq.s32.totalorder %s22, 1
      %p229 = scmp.ne.s32.totalorder %s224, %s226
      %p230 = scmp.eq.s32.totalorder %s22, 0
      %p231 = por %p229, %p230
      %p232 = scmp.ne.s32.totalorder %s224, %s226
      %p233 = scmp.eq.s32.totalorder %s27, 1
      %p234 = por %p232, %p233
      %p235 = scmp.ne.s32.totalorder %s226, %s227
      %p236 = scmp.eq.s32.totalorder %s27, 0
      %p237 = por %p235, %p236
      %p238 = scmp.ne.s32.totalorder %s226, %s227
      %p239 = scmp.eq.s32.totalorder %s28, 1
      %p240 = por %p238, %p239
      %p242 = scmp.ne.s32.totalorder %s227, %s241
      %p243 = scmp.eq.s32.totalorder %s28, 0
      %p244 = por %p242, %p243
      %s246 = sadd.s32 %s245, 1
      %p249 = scmp.eq.s32.totalorder %s22, 1
      %p250 = scmp.ne.s32.totalorder %s245, %s247
      %p251 = scmp.eq.s32.totalorder %s22, 0
      %p252 = por %p250, %p251
      %p253 = scmp.ne.s32.totalorder %s245, %s247
      %p254 = scmp.eq.s32.totalorder %s27, 1
      %p255 = por %p253, %p254
      %p256 = scmp.ne.s32.totalorder %s247, %s248
      %p257 = scmp.eq.s32.totalorder %s27, 0
      %p258 = por %p256, %p257
      %p259 = scmp.ne.s32.totalorder %s247, %s248
      %p260 = scmp.eq.s32.totalorder %s28, 1
      %p261 = por %p259, %p260
      %p263 = scmp.ne.s32.totalorder %s248, %s262
      %p264 = scmp.eq.s32.totalorder %s28, 0
      %p265 = por %p263, %p264
      %s267 = sadd.s32 %s266, 1
      %p270 = scmp.eq.s32.totalorder %s22, 1
      %p271 = scmp.ne.s32.totalorder %s266, %s268
      %p272 = scmp.eq.s32.totalorder %s22, 0
      %p273 = por %p271, %p272
      %p274 = scmp.ne.s32.totalorder %s266, %s268
      %p275 = scmp.eq.s32.totalorder %s27, 1
      %p276 = por %p274, %p275
      %p277 = scmp.ne.s32.totalorder %s268, %s269
      %p278 = scmp.eq.s32.totalorder %s27, 0
      %p279 = por %p277, %p278
      %p280 = scmp.ne.s32.totalorder %s268, %s269
      %p281 = scmp.eq.s32.totalorder %s28, 1
      %p282 = por %p280, %p281
      %p284 = scmp.ne.s32.totalorder %s269, %s283
      %p285 = scmp.eq.s32.totalorder %s28, 0
      %p286 = por %p284, %p285
      %s288 = sadd.s32 %s287, 1
      %p291 = scmp.eq.s32.totalorder %s22, 1
      %p292 = scmp.ne.s32.totalorder %s287, %s289
      %p293 = scmp.eq.s32.totalorder %s22, 0
      %p294 = por %p292, %p293
      %p295 = scmp.ne.s32.totalorder %s287, %s289
      %p296 = scmp.eq.s32.totalorder %s27, 1
      %p297 = por %p295, %p296
      %p298 = scmp.ne.s32.totalorder %s289, %s290
      %p299 = scmp.eq.s32.totalorder %s27, 0
      %p300 = por %p298, %p299
      %p301 = scmp.ne.s32.totalorder %s289, %s290
      %p302 = scmp.eq.s32.totalorder %s28, 1
      %p303 = por %p301, %p302
      %p305 = scmp.ne.s32.totalorder %s290, %s304
      %p306 = scmp.eq.s32.totalorder %s28, 0
      %p307 = por %p305, %p306
      %s308 = ssub.s32 %s22, %s29
      %p309 = scmp.eq.s32.totalorder %s308, 0
      %s311 = sadd.s32 %s310, 1
      %s312 = scalar_select %p309, %s310, %s311
      %p315 = pneg %p309
      %p316 = scmp.eq.s32.totalorder %s22, 1
      %p317 = por %p315, %p316
      %p318 = scmp.ne.s32.totalorder %s310, %s313
      %p319 = scmp.eq.s32.totalorder %s22, 0
      %p320 = por %p318, %p319
      %p321 = scmp.ne.s32.totalorder %s310, %s313
      %p322 = scmp.eq.s32.totalorder %s27, 1
      %p323 = por %p321, %p322
      %p324 = scmp.ne.s32.totalorder %s313, %s314
      %p325 = scmp.eq.s32.totalorder %s27, 0
      %p326 = por %p324, %p325
      %p327 = scmp.ne.s32.totalorder %s313, %s314
      %p328 = scmp.eq.s32.totalorder %s28, 1
      %p329 = por %p327, %p328
      %p331 = scmp.ne.s32.totalorder %s314, %s330
      %p332 = scmp.eq.s32.totalorder %s28, 0
      %p333 = por %p331, %p332
      %p334 = scmp.le.s32.totalorder 1, %s22
      %p335 = scmp.lt.s32.totalorder %s22, 3
      %p336 = pnand %p334, %p335
      %p337 = pneg %p336
      // Predicated region
      $region9: #{vit_block_forward.1} parent=5 // pred_check
        _
      $region10: #{vit_block_forward.1} parent=5 // pred_check_branch
        %339 = sbr.rel (%p336) target = $region12
      $region11: #{vit_block_forward.1} parent=5 // pred_region
        %s340 = ssub.s32 %s22, 1
        // Predicated region
        $region13: #{vit_block_forward.1} parent=11 // pred_check
          %p341 = pneg %p69
        $region14: #{vit_block_forward.1} parent=11 // pred_check_branch
          %343 = sbr.rel (%p341) target = $region16
        $region15: #{vit_block_forward.1} parent=11 // pred_region
          _
        $region16: #{vit_block_forward.1} parent=11 // pred_fallthru
          _
        // Predicated region
        $region17: #{vit_block_forward.1} parent=11 // pred_check
          %p344 = pneg %p90
        $region18: #{vit_block_forward.1} parent=11 // pred_check_branch
          %346 = sbr.rel (%p344) target = $region20
        $region19: #{vit_block_forward.1} parent=11 // pred_region
          _
        $region20: #{vit_block_forward.1} parent=11 // pred_fallthru
          _
        // Predicated region
        $region21: #{vit_block_forward.1} parent=11 // pred_check
          %p347 = pneg %p111
        $region22: #{vit_block_forward.1} parent=11 // pred_check_branch
          %349 = sbr.rel (%p347) target = $region24
        $region23: #{vit_block_forward.1} parent=11 // pred_region
          _
        $region24: #{vit_block_forward.1} parent=11 // pred_fallthru
          _
        // Predicated region
        $region25: #{vit_block_forward.1} parent=11 // pred_check
          %p350 = pneg %p132
        $region26: #{vit_block_forward.1} parent=11 // pred_check_branch
          %352 = sbr.rel (%p350) target = $region28
        $region27: #{vit_block_forward.1} parent=11 // pred_region
          _
        $region28: #{vit_block_forward.1} parent=11 // pred_fallthru
          _
        // Predicated region
        $region29: #{vit_block_forward.1} parent=11 // pred_check
          %p353 = pneg %p153
        $region30: #{vit_block_forward.1} parent=11 // pred_check_branch
          %355 = sbr.rel (%p353) target = $region32
        $region31: #{vit_block_forward.1} parent=11 // pred_region
          _
        $region32: #{vit_block_forward.1} parent=11 // pred_fallthru
          _
        // Predicated region
        $region33: #{vit_block_forward.1} parent=11 // pred_check
          %p356 = pneg %p174
        $region34: #{vit_block_forward.1} parent=11 // pred_check_branch
          %358 = sbr.rel (%p356) target = $region36
        $region35: #{vit_block_forward.1} parent=11 // pred_region
          _
        $region36: #{vit_block_forward.1} parent=11 // pred_fallthru
          _
        // Predicated region
        $region37: #{vit_block_forward.1} parent=11 // pred_check
          %p359 = pneg %p195
        $region38: #{vit_block_forward.1} parent=11 // pred_check_branch
          %361 = sbr.rel (%p359) target = $region40
        $region39: #{vit_block_forward.1} parent=11 // pred_region
          _
        $region40: #{vit_block_forward.1} parent=11 // pred_fallthru
          _
        // Predicated region
        $region41: #{vit_block_forward.1} parent=11 // pred_check
          %p362 = pneg %p216
        $region42: #{vit_block_forward.1} parent=11 // pred_check_branch
          %364 = sbr.rel (%p362) target = $region44
        $region43: #{vit_block_forward.1} parent=11 // pred_region
          _
        $region44: #{vit_block_forward.1} parent=11 // pred_fallthru
          _
        // Predicated region
        $region45: #{vit_block_forward.1} parent=11 // pred_check
          %p365 = pneg %p237
        $region46: #{vit_block_forward.1} parent=11 // pred_check_branch
          %367 = sbr.rel (%p365) target = $region48
        $region47: #{vit_block_forward.1} parent=11 // pred_region
          _
        $region48: #{vit_block_forward.1} parent=11 // pred_fallthru
          _
        // Predicated region
        $region49: #{vit_block_forward.1} parent=11 // pred_check
          %p368 = pneg %p258
        $region50: #{vit_block_forward.1} parent=11 // pred_check_branch
          %370 = sbr.rel (%p368) target = $region52
        $region51: #{vit_block_forward.1} parent=11 // pred_region
          _
        $region52: #{vit_block_forward.1} parent=11 // pred_fallthru
          _
        // Predicated region
        $region53: #{vit_block_forward.1} parent=11 // pred_check
          %p371 = pneg %p279
        $region54: #{vit_block_forward.1} parent=11 // pred_check_branch
          %373 = sbr.rel (%p371) target = $region56
        $region55: #{vit_block_forward.1} parent=11 // pred_region
          _
        $region56: #{vit_block_forward.1} parent=11 // pred_fallthru
          _
        // Predicated region
        $region57: #{vit_block_forward.1} parent=11 // pred_check
          %p374 = pneg %p300
        $region58: #{vit_block_forward.1} parent=11 // pred_check_branch
          %376 = sbr.rel (%p374) target = $region60
        $region59: #{vit_block_forward.1} parent=11 // pred_region
          _
        $region60: #{vit_block_forward.1} parent=11 // pred_fallthru
          _
      $region12: #{vit_block_forward.1} parent=5 // pred_fallthru
        _
      %p377 = scmp.lt.s32.totalorder %s22, 2
      // Predicated region
      $region61: #{vit_block_forward.1} parent=5 // pred_check
        %p378 = pneg %p377
      $region62: #{vit_block_forward.1} parent=5 // pred_check_branch
        %380 = sbr.rel (%p378) target = $region64
      $region63: #{vit_block_forward.1} parent=5 // pred_region
        // Predicated region
        $region65: #{vit_block_forward.1} parent=63 // pred_check
          %p381 = pneg %p42
        $region66: #{vit_block_forward.1} parent=63 // pred_check_branch
          %383 = sbr.rel (%p381) target = $region68
        $region67: #{vit_block_forward.1} parent=63 // pred_region
          %p384 = scmp.lt.s32.totalorder %s22, 1
          %s385 = scalar_select %p384, %s22, 1
          %s386 = smul.addr %s385, 8
          %s387 = scalar_lea.vmem %s0, %s386
        $region68: #{vit_block_forward.1} parent=63 // pred_fallthru
          _
      $region64: #{vit_block_forward.1} parent=5 // pred_fallthru
        _
      %p388 = scmp.le.s32.totalorder 1, %s22
      %p389 = scmp.lt.s32.totalorder %s22, 3
      %p390 = pnand %p388, %p389
      %p391 = pneg %p390
      // Predicated region
      $region69: #{vit_block_forward.1} parent=5 // pred_check
        _
      $region70: #{vit_block_forward.1} parent=5 // pred_check_branch
        %393 = sbr.rel (%p390) target = $region72
      $region71: #{vit_block_forward.1} parent=5 // pred_region
        %s394 = ssub.s32 %s22, 1
        %p395 = scmp.lt.s32.totalorder %s27, 1
        %s396 = scalar_select %p395, %s27, 1
        %s397 = smul.addr %s396, 8
        %s398 = scalar_lea.vmem %s0, %s397
        %p399 = pneg %p48
        %p400 = pneg %p45
        %p401 = pneg %p69
        %p402 = pneg %p66
        %p403 = pneg %p90
        %p404 = pneg %p87
        %p405 = pneg %p111
        %p406 = pneg %p108
        %p407 = pneg %p132
        %p408 = pneg %p129
        %p409 = pneg %p153
        %p410 = pneg %p150
        %p411 = pneg %p174
        %p412 = pneg %p171
        %p413 = pneg %p195
        %p414 = pneg %p192
        %p415 = pneg %p216
        %p416 = pneg %p213
        %p417 = pneg %p237
        %p418 = pneg %p234
        %p419 = pneg %p258
        %p420 = pneg %p255
        %p421 = pneg %p279
        %p422 = pneg %p276
        %p423 = pneg %p300
        %p424 = pneg %p297
        %p425 = pneg %p326
        %p426 = pneg %p323
        %s427 = sand.u32 %s313, 1
        %s428 = scalar_lea.sflag [#allocation3], %s427
        %s429 = sand.u32 %s313, 1
        %s430 = smul.addr %s429, 8
        %s431 = scalar_lea.vmem [#allocation2], %s430
        %p432 = scmp.lt.s32.totalorder %s27, 1
        %s433 = scalar_select %p432, %s27, 1
        %s434 = smul.addr %s433, 8
        %s435 = scalar_lea.vmem %s0, %s434
        %v437 = vld [vmem:[%s435] sm:$0xff]
        %v438 = vld [vmem:[%s1] sm:$0x1]
        %v439 = vld [vmem:[%s2] sm:$0x1]
        %vm440 = vcmask 261120
        %v441 = vsel %vm440, %v437, 0.0
        %442 = vadd.xlane.f32.xlu0 %v441
        %v443 = vpop.xlane.xlu0 %442
        %v444 = vrcp.pop 32.0
        %v445 = vmul.f32 %v443, %v444
        %v446 = vsub.f32 %v437, %v445
        %v447 = vmul.f32 %v446, %v446
        %v448 = vsel %vm440, %v447, 0.0
        %449 = vadd.xlane.f32.xlu0 %v448
        %v450 = vpop.xlane.xlu0 %449
        %v451 = vmul.f32 %v450, %v444
        %v452 = vadd.f32 %v451, 1e-05
        %v453 = vrsqrt.pop %v452
        %v454 = vmul.f32 %v446, %v453
        %v456 = vlaneseq
        %v457 = vshrl.u32 %v456, 7
        %v458 = vsub.s32 0, %v457
        %v459 = vrot.slane %v438, %v458
        %v461 = vmul.f32 %v454, %v459
        %v463 = vlaneseq
        %v464 = vshrl.u32 %v463, 7
        %v465 = vsub.s32 0, %v464
        %v466 = vrot.slane %v439, %v465
        %v468 = vadd.f32 %v461, %v466
        %v469 = vpack.c.bf16 %v468, %v468
        %v470 = vld [vmem:[%s3] sm:$0xf]
        %v471 = vld [vmem:[%s3 + $0x4] sm:$0xf]
        %v472 = vld [vmem:[%s3 + $0x8] sm:$0xf]
        %v473 = vld [vmem:[%s3 + $0xc] sm:$0xf]
        %v474 = vld [vmem:[%s4] sm:$0x1]
        %v476 = vlaneseq
        %v477 = vshrl.u32 %v476, 7
        %v478 = vsub.s32 0, %v477
        %v479 = vrot.slane %v474, %v478
        %v485 = vunpack.c.l.b16 %v470
        %v486 = vunpack.c.l.b16 %v471
        %v487 = vunpack.c.l.b16 %v472
        %v488 = vunpack.c.l.b16 %v473
        %v489 = vpack.c.b16 %v486, %v485
        %v490 = vpack.c.b16 %v488, %v487
        %v494 = vsel %vm440, %v469, 0
        %496 = vmatprep.subr.bf16.mxu0 0
        %497 = vmatpush1.bf16.msra.mxu0 %v489
        %498 = vmatprep.subr.bf16.mxu0 0
        %499 = vmatpush1.bf16.msra.mxu0 %v490
        %500 = vmatprep.subr.bf16.mxu0 0
        %501 = vmatpush1.bf16.msra.mxu0 0
        %502 = vmatprep.subr.bf16.mxu0 0
        %503 = vmatpush1.bf16.msra.mxu0 0
        %504 = vmatprep.subr.bf16.mxu0 0
        %505 = vmatpush1.bf16.msra.mxu0 0
        %506 = vmatprep.subr.bf16.mxu0 0
        %507 = vmatpush1.bf16.msra.mxu0 0
        %508 = vmatprep.subr.bf16.mxu0 0
        %509 = vmatpush1.bf16.msra.mxu0 0
        %510 = vmatprep.subr.bf16.mxu0 0
        %511 = vmatpush1.bf16.msra.mxu0 0
        %512 = vmatprep.subr.bf16.mxu0 0
        %513 = vmatpush1.bf16.msra.mxu0 0
        %514 = vmatprep.subr.bf16.mxu0 0
        %515 = vmatpush1.bf16.msra.mxu0 0
        %516 = vmatprep.subr.bf16.mxu0 0
        %517 = vmatpush1.bf16.msra.mxu0 0
        %518 = vmatprep.subr.bf16.mxu0 0
        %519 = vmatpush1.bf16.msra.mxu0 0
        %520 = vmatprep.subr.bf16.mxu0 0
        %521 = vmatpush1.bf16.msra.mxu0 0
        %522 = vmatprep.subr.bf16.mxu0 0
        %523 = vmatpush1.bf16.msra.mxu0 0
        %524 = vmatprep.subr.bf16.mxu0 0
        %525 = vmatpush1.bf16.msra.mxu0 0
        %526 = vmatprep.subr.bf16.mxu0 0
        %527 = vmatpush1.bf16.msra.mxu0 0
        %528 = vmatprep.mubr.bf16.mxu0 0
        %529 = vmatmul.mubr.bf16.gmra.mrb[0].mxu0 %v494
        %v530 = vpop.f32.mrb[0].mxu0
        %v531 = vadd.f32 %v479, %v530
        %v532 = vpop.f32.mrb[0].mxu0
        %v533 = vpop.f32.mrb[0].mxu0
        %v534 = vpop.f32.mrb[0].mxu0
        %535 = vdwg.mxu0
        %537 = vrot.lane.b32.xlu0 %v531, 120
        %v538 = vpop.permute.xlu0 %537
        %540 = vrot.lane.b32.xlu0 %v531, 112
        %v541 = vpop.permute.xlu0 %540
        %543 = vrot.lane.b32.xlu0 %v531, 104
        %v544 = vpop.permute.xlu0 %543
        %v546 = vcombine.low %v531, %v541
        %v547 = vcombine.high %v531, %v541
        %v549 = vunpack.c.l.s4 1983009808
        %v550 = vunpack.c.0.s8 %v549
        %v551 = vlaneseq
        %v552 = vshrl.u32 %v551, 7
        %v553 = vsub.s32 %v550, %v552
        %v554 = vrot.slane %v546, %v553
        %v556 = vunpack.c.l.s4 1983009808
        %v557 = vunpack.c.0.s8 %v556
        %v558 = vlaneseq
        %v559 = vshrl.u32 %v558, 7
        %v560 = vsub.s32 %v557, %v559
        %v561 = vrot.slane %v547, %v560
        %v562 = vcombine.low %v538, %v544
        %v563 = vcombine.high %v538, %v544
        %v565 = vunpack.c.l.s4 1983009808
        %v566 = vunpack.c.0.s8 %v565
        %v567 = vlaneseq
        %v568 = vshrl.u32 %v567, 7
        %v569 = vsub.s32 %v566, %v568
        %v570 = vrot.slane %v562, %v569
        %v572 = vunpack.c.l.s4 1983009808
        %v573 = vunpack.c.0.s8 %v572
        %v574 = vlaneseq
        %v575 = vshrl.u32 %v574, 7
        %v576 = vsub.s32 %v573, %v575
        %v577 = vrot.slane %v563, %v576
        %v578 = vcombine.low %v554, %v570
        %v579 = vcombine.high %v554, %v570
        %v581 = vunpack.c.l.s4 1934713408
        %v582 = vunpack.c.0.s8 %v581
        %v583 = vlaneseq
        %v584 = vshrl.u32 %v583, 7
        %v585 = vsub.s32 %v582, %v584
        %v586 = vrot.slane %v578, %v585
        %v588 = vunpack.c.l.s4 1934713408
        %v589 = vunpack.c.0.s8 %v588
        %v590 = vlaneseq
        %v591 = vshrl.u32 %v590, 7
        %v592 = vsub.s32 %v589, %v591
        %v593 = vrot.slane %v579, %v592
        %v594 = vcombine.low %v561, %v577
        %v595 = vcombine.high %v561, %v577
        %v597 = vunpack.c.l.s4 1934713408
        %v598 = vunpack.c.0.s8 %v597
        %v599 = vlaneseq
        %v600 = vshrl.u32 %v599, 7
        %v601 = vsub.s32 %v598, %v600
        %v602 = vrot.slane %v594, %v601
        %v604 = vunpack.c.l.s4 1934713408
        %v605 = vunpack.c.0.s8 %v604
        %v606 = vlaneseq
        %v607 = vshrl.u32 %v606, 7
        %v608 = vsub.s32 %v605, %v607
        %v609 = vrot.slane %v595, %v608
        %v610 = vcombine.high %v586, 0.0
        %v611 = vcombine.high %v593, 0.0
        %v612 = vcombine.high %v602, 0.0
        %v613 = vcombine.high %v609, 0.0
        %v614 = vcombine.low %v586, %v593
        %v616 = vunpack.c.l.s4 1983009808
        %v617 = vunpack.c.0.s8 %v616
        %v618 = vlaneseq
        %v619 = vshrl.u32 %v618, 7
        %v620 = vsub.s32 %v617, %v619
        %v621 = vrot.slane %v614, %v620
        %v622 = vcombine.low %v610, %v611
        %v624 = vunpack.c.l.s4 1983009808
        %v625 = vunpack.c.0.s8 %v624
        %v626 = vlaneseq
        %v627 = vshrl.u32 %v626, 7
        %v628 = vsub.s32 %v625, %v627
        %v629 = vrot.slane %v622, %v628
        %v630 = vcombine.low %v602, %v609
        %v632 = vunpack.c.l.s4 1983009808
        %v633 = vunpack.c.0.s8 %v632
        %v634 = vlaneseq
        %v635 = vshrl.u32 %v634, 7
        %v636 = vsub.s32 %v633, %v635
        %v637 = vrot.slane %v630, %v636
        %v638 = vcombine.low %v612, %v613
        %v640 = vunpack.c.l.s4 1983009808
        %v641 = vunpack.c.0.s8 %v640
        %v642 = vlaneseq
        %v643 = vshrl.u32 %v642, 7
        %v644 = vsub.s32 %v641, %v643
        %v645 = vrot.slane %v638, %v644
        %v646 = vcombine.low %v621, %v629
        %v647 = vcombine.high %v621, %v629
        %v649 = vunpack.c.l.s4 1934713408
        %v650 = vunpack.c.0.s8 %v649
        %v651 = vlaneseq
        %v652 = vshrl.u32 %v651, 7
        %v653 = vsub.s32 %v650, %v652
        %v654 = vrot.slane %v646, %v653
        %v656 = vunpack.c.l.s4 1934713408
        %v657 = vunpack.c.0.s8 %v656
        %v658 = vlaneseq
        %v659 = vshrl.u32 %v658, 7
        %v660 = vsub.s32 %v657, %v659
        %v661 = vrot.slane %v647, %v660
        %v662 = vcombine.low %v637, %v645
        %v663 = vcombine.high %v637, %v645
        %v665 = vunpack.c.l.s4 1934713408
        %v666 = vunpack.c.0.s8 %v665
        %v667 = vlaneseq
        %v668 = vshrl.u32 %v667, 7
        %v669 = vsub.s32 %v666, %v668
        %v670 = vrot.slane %v662, %v669
        %v672 = vunpack.c.l.s4 1934713408
        %v673 = vunpack.c.0.s8 %v672
        %v674 = vlaneseq
        %v675 = vshrl.u32 %v674, 7
        %v676 = vsub.s32 %v673, %v675
        %v677 = vrot.slane %v663, %v676
        %v678 = vcombine.low %v654, %v670
        %v679 = vcombine.high %v654, %v670
        %v680 = vcombine.low %v661, %v677
        %v681 = vcombine.high %v661, %v677
        %682 = vrot.lane.b32.xlu0 %v531, 96
        %v683 = vpop.permute.xlu0 %682
        %684 = vrot.lane.b32.xlu0 %v538, 96
        %v685 = vpop.permute.xlu0 %684
        %686 = vrot.lane.b32.xlu0 %v541, 96
        %v687 = vpop.permute.xlu0 %686
        %688 = vrot.lane.b32.xlu0 %v544, 96
        %v689 = vpop.permute.xlu0 %688
        %v694 = vcombine.low %v683, %v687
        %v695 = vcombine.high %v683, %v687
        %v697 = vunpack.c.l.s4 1983009808
        %v698 = vunpack.c.0.s8 %v697
        %v699 = vlaneseq
        %v700 = vshrl.u32 %v699, 7
        %v701 = vsub.s32 %v698, %v700
        %v702 = vrot.slane %v694, %v701
        %v704 = vunpack.c.l.s4 1983009808
        %v705 = vunpack.c.0.s8 %v704
        %v706 = vlaneseq
        %v707 = vshrl.u32 %v706, 7
        %v708 = vsub.s32 %v705, %v707
        %v709 = vrot.slane %v695, %v708
        %v710 = vcombine.low %v685, %v689
        %v711 = vcombine.high %v685, %v689
        %v713 = vunpack.c.l.s4 1983009808
        %v714 = vunpack.c.0.s8 %v713
        %v715 = vlaneseq
        %v716 = vshrl.u32 %v715, 7
        %v717 = vsub.s32 %v714, %v716
        %v718 = vrot.slane %v710, %v717
        %v720 = vunpack.c.l.s4 1983009808
        %v721 = vunpack.c.0.s8 %v720
        %v722 = vlaneseq
        %v723 = vshrl.u32 %v722, 7
        %v724 = vsub.s32 %v721, %v723
        %v725 = vrot.slane %v711, %v724
        %v726 = vcombine.low %v702, %v718
        %v727 = vcombine.high %v702, %v718
        %v729 = vunpack.c.l.s4 1934713408
        %v730 = vunpack.c.0.s8 %v729
        %v731 = vlaneseq
        %v732 = vshrl.u32 %v731, 7
        %v733 = vsub.s32 %v730, %v732
        %v734 = vrot.slane %v726, %v733
        %v736 = vunpack.c.l.s4 1934713408
        %v737 = vunpack.c.0.s8 %v736
        %v738 = vlaneseq
        %v739 = vshrl.u32 %v738, 7
        %v740 = vsub.s32 %v737, %v739
        %v741 = vrot.slane %v727, %v740
        %v742 = vcombine.low %v709, %v725
        %v743 = vcombine.high %v709, %v725
        %v745 = vunpack.c.l.s4 1934713408
        %v746 = vunpack.c.0.s8 %v745
        %v747 = vlaneseq
        %v748 = vshrl.u32 %v747, 7
        %v749 = vsub.s32 %v746, %v748
        %v750 = vrot.slane %v742, %v749
        %v752 = vunpack.c.l.s4 1934713408
        %v753 = vunpack.c.0.s8 %v752
        %v754 = vlaneseq
        %v755 = vshrl.u32 %v754, 7
        %v756 = vsub.s32 %v753, %v755
        %v757 = vrot.slane %v743, %v756
        %v758 = vcombine.high %v734, 0.0
        %v759 = vcombine.high %v741, 0.0
        %v760 = vcombine.high %v750, 0.0
        %v761 = vcombine.high %v757, 0.0
        %v762 = vcombine.low %v734, %v741
        %v764 = vunpack.c.l.s4 1983009808
        %v765 = vunpack.c.0.s8 %v764
        %v766 = vlaneseq
        %v767 = vshrl.u32 %v766, 7
        %v768 = vsub.s32 %v765, %v767
        %v769 = vrot.slane %v762, %v768
        %v770 = vcombine.low %v758, %v759
        %v772 = vunpack.c.l.s4 1983009808
        %v773 = vunpack.c.0.s8 %v772
        %v774 = vlaneseq
        %v775 = vshrl.u32 %v774, 7
        %v776 = vsub.s32 %v773, %v775
        %v777 = vrot.slane %v770, %v776
        %v778 = vcombine.low %v750, %v757
        %v780 = vunpack.c.l.s4 1983009808
        %v781 = vunpack.c.0.s8 %v780
        %v782 = vlaneseq
        %v783 = vshrl.u32 %v782, 7
        %v784 = vsub.s32 %v781, %v783
        %v785 = vrot.slane %v778, %v784
        %v786 = vcombine.low %v760, %v761
        %v788 = vunpack.c.l.s4 1983009808
        %v789 = vunpack.c.0.s8 %v788
        %v790 = vlaneseq
        %v791 = vshrl.u32 %v790, 7
        %v792 = vsub.s32 %v789, %v791
        %v793 = vrot.slane %v786, %v792
        %v794 = vcombine.low %v769, %v777
        %v795 = vcombine.high %v769, %v777
        %v797 = vunpack.c.l.s4 1934713408
        %v798 = vunpack.c.0.s8 %v797
        %v799 = vlaneseq
        %v800 = vshrl.u32 %v799, 7
        %v801 = vsub.s32 %v798, %v800
        %v802 = vrot.slane %v794, %v801
        %v804 = vunpack.c.l.s4 1934713408
        %v805 = vunpack.c.0.s8 %v804
        %v806 = vlaneseq
        %v807 = vshrl.u32 %v806, 7
        %v808 = vsub.s32 %v805, %v807
        %v809 = vrot.slane %v795, %v808
        %v810 = vcombine.low %v785, %v793
        %v811 = vcombine.high %v785, %v793
        %v813 = vunpack.c.l.s4 1934713408
        %v814 = vunpack.c.0.s8 %v813
        %v815 = vlaneseq
        %v816 = vshrl.u32 %v815, 7
        %v817 = vsub.s32 %v814, %v816
        %v818 = vrot.slane %v810, %v817
        %v820 = vunpack.c.l.s4 1934713408
        %v821 = vunpack.c.0.s8 %v820
        %v822 = vlaneseq
        %v823 = vshrl.u32 %v822, 7
        %v824 = vsub.s32 %v821, %v823
        %v825 = vrot.slane %v811, %v824
        %v826 = vcombine.low %v802, %v818
        %v827 = vcombine.high %v802, %v818
        %v828 = vcombine.low %v809, %v825
        %v829 = vcombine.high %v809, %v825
        %830 = vrot.lane.b32.xlu0 %v531, 64
        %v831 = vpop.permute.xlu0 %830
        %832 = vrot.lane.b32.xlu0 %v538, 64
        %v833 = vpop.permute.xlu0 %832
        %834 = vrot.lane.b32.xlu0 %v541, 64
        %v835 = vpop.permute.xlu0 %834
        %836 = vrot.lane.b32.xlu0 %v544, 64
        %v837 = vpop.permute.xlu0 %836
        %v842 = vcombine.low %v831, %v835
        %v843 = vcombine.high %v831, %v835
        %v845 = vunpack.c.l.s4 1983009808
        %v846 = vunpack.c.0.s8 %v845
        %v847 = vlaneseq
        %v848 = vshrl.u32 %v847, 7
        %v849 = vsub.s32 %v846, %v848
        %v850 = vrot.slane %v842, %v849
        %v852 = vunpack.c.l.s4 1983009808
        %v853 = vunpack.c.0.s8 %v852
        %v854 = vlaneseq
        %v855 = vshrl.u32 %v854, 7
        %v856 = vsub.s32 %v853, %v855
        %v857 = vrot.slane %v843, %v856
        %v858 = vcombine.low %v833, %v837
        %v859 = vcombine.high %v833, %v837
        %v861 = vunpack.c.l.s4 1983009808
        %v862 = vunpack.c.0.s8 %v861
        %v863 = vlaneseq
        %v864 = vshrl.u32 %v863, 7
        %v865 = vsub.s32 %v862, %v864
        %v866 = vrot.slane %v858, %v865
        %v868 = vunpack.c.l.s4 1983009808
        %v869 = vunpack.c.0.s8 %v868
        %v870 = vlaneseq
        %v871 = vshrl.u32 %v870, 7
        %v872 = vsub.s32 %v869, %v871
        %v873 = vrot.slane %v859, %v872
        %v874 = vcombine.low %v850, %v866
        %v875 = vcombine.high %v850, %v866
        %v877 = vunpack.c.l.s4 1934713408
        %v878 = vunpack.c.0.s8 %v877
        %v879 = vlaneseq
        %v880 = vshrl.u32 %v879, 7
        %v881 = vsub.s32 %v878, %v880
        %v882 = vrot.slane %v874, %v881
        %v884 = vunpack.c.l.s4 1934713408
        %v885 = vunpack.c.0.s8 %v884
        %v886 = vlaneseq
        %v887 = vshrl.u32 %v886, 7
        %v888 = vsub.s32 %v885, %v887
        %v889 = vrot.slane %v875, %v888
        %v890 = vcombine.low %v857, %v873
        %v891 = vcombine.high %v857, %v873
        %v893 = vunpack.c.l.s4 1934713408
        %v894 = vunpack.c.0.s8 %v893
        %v895 = vlaneseq
        %v896 = vshrl.u32 %v895, 7
        %v897 = vsub.s32 %v894, %v896
        %v898 = vrot.slane %v890, %v897
        %v900 = vunpack.c.l.s4 1934713408
        %v901 = vunpack.c.0.s8 %v900
        %v902 = vlaneseq
        %v903 = vshrl.u32 %v902, 7
        %v904 = vsub.s32 %v901, %v903
        %v905 = vrot.slane %v891, %v904
        %v906 = vcombine.high %v882, 0.0
        %v907 = vcombine.high %v889, 0.0
        %v908 = vcombine.high %v898, 0.0
        %v909 = vcombine.high %v905, 0.0
        %v910 = vcombine.low %v882, %v889
        %v912 = vunpack.c.l.s4 1983009808
        %v913 = vunpack.c.0.s8 %v912
        %v914 = vlaneseq
        %v915 = vshrl.u32 %v914, 7
        %v916 = vsub.s32 %v913, %v915
        %v917 = vrot.slane %v910, %v916
        %v918 = vcombine.low %v906, %v907
        %v920 = vunpack.c.l.s4 1983009808
        %v921 = vunpack.c.0.s8 %v920
        %v922 = vlaneseq
        %v923 = vshrl.u32 %v922, 7
        %v924 = vsub.s32 %v921, %v923
        %v925 = vrot.slane %v918, %v924
        %v926 = vcombine.low %v898, %v905
        %v928 = vunpack.c.l.s4 1983009808
        %v929 = vunpack.c.0.s8 %v928
        %v930 = vlaneseq
        %v931 = vshrl.u32 %v930, 7
        %v932 = vsub.s32 %v929, %v931
        %v933 = vrot.slane %v926, %v932
        %v934 = vcombine.low %v908, %v909
        %v936 = vunpack.c.l.s4 1983009808
        %v937 = vunpack.c.0.s8 %v936
        %v938 = vlaneseq
        %v939 = vshrl.u32 %v938, 7
        %v940 = vsub.s32 %v937, %v939
        %v941 = vrot.slane %v934, %v940
        %v942 = vcombine.low %v917, %v925
        %v943 = vcombine.high %v917, %v925
        %v945 = vunpack.c.l.s4 1934713408
        %v946 = vunpack.c.0.s8 %v945
        %v947 = vlaneseq
        %v948 = vshrl.u32 %v947, 7
        %v949 = vsub.s32 %v946, %v948
        %v950 = vrot.slane %v942, %v949
        %v952 = vunpack.c.l.s4 1934713408
        %v953 = vunpack.c.0.s8 %v952
        %v954 = vlaneseq
        %v955 = vshrl.u32 %v954, 7
        %v956 = vsub.s32 %v953, %v955
        %v957 = vrot.slane %v943, %v956
        %v958 = vcombine.low %v933, %v941
        %v959 = vcombine.high %v933, %v941
        %v961 = vunpack.c.l.s4 1934713408
        %v962 = vunpack.c.0.s8 %v961
        %v963 = vlaneseq
        %v964 = vshrl.u32 %v963, 7
        %v965 = vsub.s32 %v962, %v964
        %v966 = vrot.slane %v958, %v965
        %v968 = vunpack.c.l.s4 1934713408
        %v969 = vunpack.c.0.s8 %v968
        %v970 = vlaneseq
        %v971 = vshrl.u32 %v970, 7
        %v972 = vsub.s32 %v969, %v971
        %v973 = vrot.slane %v959, %v972
        %v974 = vcombine.low %v950, %v966
        %v975 = vcombine.high %v950, %v966
        %v976 = vcombine.low %v957, %v973
        %v977 = vcombine.high %v957, %v973
        %v978 = vpack.c.bf16 %v678, %v678
        %v979 = vpack.c.bf16 %v679, %v679
        %v980 = vpack.c.bf16 %v680, %v680
        %v981 = vpack.c.bf16 %v681, %v681
        %v982 = vpack.c.bf16 %v826, %v826
        %v983 = vpack.c.bf16 %v827, %v827
        %v984 = vpack.c.bf16 %v828, %v828
        %v985 = vpack.c.bf16 %v829, %v829
        %vm986 = vcmask 64512
        %v988 = vsel %vm986, %v978, 0
        %v991 = vsel %vm986, %v982, 0
        %993 = vmatprep.subr.bf16.mxu0 0
        %994 = vmatpush1.bf16.xpose.msra.mxu0 %v991
        %995 = vmatprep.subr.bf16.mxu0 0
        %996 = vmatpush1.bf16.xpose.msra.mxu0 0
        %997 = vmatprep.subr.bf16.mxu0 0
        %998 = vmatpush1.bf16.xpose.msra.mxu0 0
        %999 = vmatprep.subr.bf16.mxu0 0
        %1000 = vmatpush1.bf16.xpose.msra.mxu0 0
        %1001 = vmatprep.subr.bf16.mxu0 0
        %1002 = vmatpush1.bf16.xpose.msra.mxu0 0
        %1003 = vmatprep.subr.bf16.mxu0 0
        %1004 = vmatpush1.bf16.xpose.msra.mxu0 0
        %1005 = vmatprep.subr.bf16.mxu0 0
        %1006 = vmatpush1.bf16.xpose.msra.mxu0 0
        %1007 = vmatprep.subr.bf16.mxu0 0
        %1008 = vmatpush1.bf16.xpose.msra.mxu0 0
        %1009 = vmatprep.subr.bf16.mxu0 0
        %1010 = vmatpush1.bf16.xpose.msra.mxu0 0
        %1011 = vmatprep.subr.bf16.mxu0 0
        %1012 = vmatpush1.bf16.xpose.msra.mxu0 0
        %1013 = vmatprep.subr.bf16.mxu0 0
        %1014 = vmatpush1.bf16.xpose.msra.mxu0 0
        %1015 = vmatprep.subr.bf16.mxu0 0
        %1016 = vmatpush1.bf16.xpose.msra.mxu0 0
        %1017 = vmatprep.subr.bf16.mxu0 0
        %1018 = vmatpush1.bf16.xpose.msra.mxu0 0
        %1019 = vmatprep.subr.bf16.mxu0 0
        %1020 = vmatpush1.bf16.xpose.msra.mxu0 0
        %1021 = vmatprep.subr.bf16.mxu0 0
        %1022 = vmatpush1.bf16.xpose.msra.mxu0 0
        %1023 = vmatprep.subr.bf16.mxu0 0
        %1024 = vmatpush1.bf16.xpose.msra.mxu0 0
        %1025 = vmatprep.mubr.bf16.mxu0 0
        %1026 = vmatmul.mubr.bf16.gmra.mrb[0].mxu0 %v988
        %v1027 = vpop.f32.mrb[0].mxu0
        %v1028 = vadd.f32 0.0, %v1027
        %v1029 = vpop.f32.mrb[0].mxu0
        %v1030 = vpop.f32.mrb[0].mxu0
        %v1031 = vpop.f32.mrb[0].mxu0
        %1032 = vdwg.mxu0
        %v1034 = vsel %vm986, %v979, 0
        %v1037 = vsel %vm986, %v983, 0
        %1039 = vmatprep.subr.bf16.mxu0 0
        %1040 = vmatpush1.bf16.xpose.msra.mxu0 %v1037
        %1041 = vmatprep.subr.bf16.mxu0 0
        %1042 = vmatpush1.bf16.xpose.msra.mxu0 0
        %1043 = vmatprep.subr.bf16.mxu0 0
        %1044 = vmatpush1.bf16.xpose.msra.mxu0 0
        %1045 = vmatprep.subr.bf16.mxu0 0
        %1046 = vmatpush1.bf16.xpose.msra.mxu0 0
        %1047 = vmatprep.subr.bf16.mxu0 0
        %1048 = vmatpush1.bf16.xpose.msra.mxu0 0
        %1049 = vmatprep.subr.bf16.mxu0 0
        %1050 = vmatpush1.bf16.xpose.msra.mxu0 0
        %1051 = vmatprep.subr.bf16.mxu0 0
        %1052 = vmatpush1.bf16.xpose.msra.mxu0 0
        %1053 = vmatprep.subr.bf16.mxu0 0
        %1054 = vmatpush1.bf16.xpose.msra.mxu0 0
        %1055 = vmatprep.subr.bf16.mxu0 0
        %1056 = vmatpush1.bf16.xpose.msra.mxu0 0
        %1057 = vmatprep.subr.bf16.mxu0 0
        %1058 = vmatpush1.bf16.xpose.msra.mxu0 0
        %1059 = vmatprep.subr.bf16.mxu0 0
        %1060 = vmatpush1.bf16.xpose.msra.mxu0 0
        %1061 = vmatprep.subr.bf16.mxu0 0
        %1062 = vmatpush1.bf16.xpose.msra.mxu0 0
        %1063 = vmatprep.subr.bf16.mxu0 0
        %1064 = vmatpush1.bf16.xpose.msra.mxu0 0
        %1065 = vmatprep.subr.bf16.mxu0 0
        %1066 = vmatpush1.bf16.xpose.msra.mxu0 0
        %1067 = vmatprep.subr.bf16.mxu0 0
        %1068 = vmatpush1.bf16.xpose.msra.mxu0 0
        %1069 = vmatprep.subr.bf16.mxu0 0
        %1070 = vmatpush1.bf16.xpose.msra.mxu0 0
        %1071 = vmatprep.mubr.bf16.mxu0 0
        %1072 = vmatmul.mubr.bf16.gmra.mrb[0].mxu0 %v1034
        %v1073 = vpop.f32.mrb[0].mxu0
        %v1074 = vadd.f32 0.0, %v1073
        %v1075 = vpop.f32.mrb[0].mxu0
        %v1076 = vpop.f32.mrb[0].mxu0
        %v1077 = vpop.f32.mrb[0].mxu0
        %1078 = vdwg.mxu0
        %v1080 = vsel %vm986, %v980, 0
        %v1083 = vsel %vm986, %v984, 0
        %1085 = vmatprep.subr.bf16.mxu0 0
        %1086 = vmatpush1.bf16.xpose.msra.mxu0 %v1083
        %1087 = vmatprep.subr.bf16.mxu0 0
        %1088 = vmatpush1.bf16.xpose.msra.mxu0 0
        %1089 = vmatprep.subr.bf16.mxu0 0
        %1090 = vmatpush1.bf16.xpose.msra.mxu0 0
        %1091 = vmatprep.subr.bf16.mxu0 0
        %1092 = vmatpush1.bf16.xpose.msra.mxu0 0
        %1093 = vmatprep.subr.bf16.mxu0 0
        %1094 = vmatpush1.bf16.xpose.msra.mxu0 0
        %1095 = vmatprep.subr.bf16.mxu0 0
        %1096 = vmatpush1.bf16.xpose.msra.mxu0 0
        %1097 = vmatprep.subr.bf16.mxu0 0
        %1098 = vmatpush1.bf16.xpose.msra.mxu0 0
        %1099 = vmatprep.subr.bf16.mxu0 0
        %1100 = vmatpush1.bf16.xpose.msra.mxu0 0
        %1101 = vmatprep.subr.bf16.mxu0 0
        %1102 = vmatpush1.bf16.xpose.msra.mxu0 0
        %1103 = vmatprep.subr.bf16.mxu0 0
        %1104 = vmatpush1.bf16.xpose.msra.mxu0 0
        %1105 = vmatprep.subr.bf16.mxu0 0
        %1106 = vmatpush1.bf16.xpose.msra.mxu0 0
        %1107 = vmatprep.subr.bf16.mxu0 0
        %1108 = vmatpush1.bf16.xpose.msra.mxu0 0
        %1109 = vmatprep.subr.bf16.mxu0 0
        %1110 = vmatpush1.bf16.xpose.msra.mxu0 0
        %1111 = vmatprep.subr.bf16.mxu0 0
        %1112 = vmatpush1.bf16.xpose.msra.mxu0 0
        %1113 = vmatprep.subr.bf16.mxu0 0
        %1114 = vmatpush1.bf16.xpose.msra.mxu0 0
        %1115 = vmatprep.subr.bf16.mxu0 0
        %1116 = vmatpush1.bf16.xpose.msra.mxu0 0
        %1117 = vmatprep.mubr.bf16.mxu0 0
        %1118 = vmatmul.mubr.bf16.gmra.mrb[0].mxu0 %v1080
        %v1119 = vpop.f32.mrb[0].mxu0
        %v1120 = vadd.f32 0.0, %v1119
        %v1121 = vpop.f32.mrb[0].mxu0
        %v1122 = vpop.f32.mrb[0].mxu0
        %v1123 = vpop.f32.mrb[0].mxu0
        %1124 = vdwg.mxu0
        %v1126 = vsel %vm986, %v981, 0
        %v1129 = vsel %vm986, %v985, 0
        %1131 = vmatprep.subr.bf16.mxu0 0
        %1132 = vmatpush1.bf16.xpose.msra.mxu0 %v1129
        %1133 = vmatprep.subr.bf16.mxu0 0
        %1134 = vmatpush1.bf16.xpose.msra.mxu0 0
        %1135 = vmatprep.subr.bf16.mxu0 0
        %1136 = vmatpush1.bf16.xpose.msra.mxu0 0
        %1137 = vmatprep.subr.bf16.mxu0 0
        %1138 = vmatpush1.bf16.xpose.msra.mxu0 0
        %1139 = vmatprep.subr.bf16.mxu0 0
        %1140 = vmatpush1.bf16.xpose.msra.mxu0 0
        %1141 = vmatprep.subr.bf16.mxu0 0
        %1142 = vmatpush1.bf16.xpose.msra.mxu0 0
        %1143 = vmatprep.subr.bf16.mxu0 0
        %1144 = vmatpush1.bf16.xpose.msra.mxu0 0
        %1145 = vmatprep.subr.bf16.mxu0 0
        %1146 = vmatpush1.bf16.xpose.msra.mxu0 0
        %1147 = vmatprep.subr.bf16.mxu0 0
        %1148 = vmatpush1.bf16.xpose.msra.mxu0 0
        %1149 = vmatprep.subr.bf16.mxu0 0
        %1150 = vmatpush1.bf16.xpose.msra.mxu0 0
        %1151 = vmatprep.subr.bf16.mxu0 0
        %1152 = vmatpush1.bf16.xpose.msra.mxu0 0
        %1153 = vmatprep.subr.bf16.mxu0 0
        %1154 = vmatpush1.bf16.xpose.msra.mxu0 0
        %1155 = vmatprep.subr.bf16.mxu0 0
        %1156 = vmatpush1.bf16.xpose.msra.mxu0 0
        %1157 = vmatprep.subr.bf16.mxu0 0
        %1158 = vmatpush1.bf16.xpose.msra.mxu0 0
        %1159 = vmatprep.subr.bf16.mxu0 0
        %1160 = vmatpush1.bf16.xpose.msra.mxu0 0
        %1161 = vmatprep.subr.bf16.mxu0 0
        %1162 = vmatpush1.bf16.xpose.msra.mxu0 0
        %1163 = vmatprep.mubr.bf16.mxu0 0
        %1164 = vmatmul.mubr.bf16.gmra.mrb[0].mxu0 %v1126
        %v1165 = vpop.f32.mrb[0].mxu0
        %v1166 = vadd.f32 0.0, %v1165
        %v1167 = vpop.f32.mrb[0].mxu0
        %v1168 = vpop.f32.mrb[0].mxu0
        %v1169 = vpop.f32.mrb[0].mxu0
        %1170 = vdwg.mxu0
        %v1171 = vmul.f32 %v1028, 0.35355338
        %v1172 = vmul.f32 %v1074, 0.35355338
        %v1173 = vmul.f32 %v1120, 0.35355338
        %v1174 = vmul.f32 %v1166, 0.35355338
        %v1175 = vsel %vm986, %v1171, -inf
        %1176 = vmax.xlane.f32.xlu0 %v1175
        %v1177 = vpop.xlane.xlu0 %1176
        %v1178 = vsel %vm986, %v1172, -inf
        %1179 = vmax.xlane.f32.xlu0 %v1178
        %v1180 = vpop.xlane.xlu0 %1179
        %v1181 = vsel %vm986, %v1173, -inf
        %1182 = vmax.xlane.f32.xlu0 %v1181
        %v1183 = vpop.xlane.xlu0 %1182
        %v1184 = vsel %vm986, %v1174, -inf
        %1185 = vmax.xlane.f32.xlu0 %v1184
        %v1186 = vpop.xlane.xlu0 %1185
        %v1187 = vsub.f32 %v1171, %v1177
        %v1188 = vsub.f32 %v1172, %v1180
        %v1189 = vsub.f32 %v1173, %v1183
        %v1190 = vsub.f32 %v1174, %v1186
        %v1191 = vmul.f32 %v1187, 1.442695
        %v1192 = vpow.pop %v1191
        %v1193 = vmul.f32 %v1188, 1.442695
        %v1194 = vpow.pop %v1193
        %v1195 = vmul.f32 %v1189, 1.442695
        %v1196 = vpow.pop %v1195
        %v1197 = vmul.f32 %v1190, 1.442695
        %v1198 = vpow.pop %v1197
        %v1199 = vsel %vm986, %v1192, 0.0
        %1200 = vadd.xlane.f32.xlu0 %v1199
        %v1201 = vpop.xlane.xlu0 %1200
        %v1202 = vsel %vm986, %v1194, 0.0
        %1203 = vadd.xlane.f32.xlu0 %v1202
        %v1204 = vpop.xlane.xlu0 %1203
        %v1205 = vsel %vm986, %v1196, 0.0
        %1206 = vadd.xlane.f32.xlu0 %v1205
        %v1207 = vpop.xlane.xlu0 %1206
        %v1208 = vsel %vm986, %v1198, 0.0
        %1209 = vadd.xlane.f32.xlu0 %v1208
        %v1210 = vpop.xlane.xlu0 %1209
        %v1211 = vrcp.pop %v1201
        %v1212 = vrcp.pop %v1204
        %v1213 = vrcp.pop %v1207
        %v1214 = vrcp.pop %v1210
        %v1215 = vmul.f32 %v1192, %v1211
        %v1216 = vmul.f32 %v1194, %v1212
        %v1217 = vmul.f32 %v1196, %v1213
        %v1218 = vmul.f32 %v1198, %v1214
        %v1219 = vpack.c.bf16 %v1215, %v1215
        %v1220 = vpack.c.bf16 %v1216, %v1216
        %v1221 = vpack.c.bf16 %v1217, %v1217
        %v1222 = vpack.c.bf16 %v1218, %v1218
        %v1223 = vpack.c.bf16 %v974, %v974
        %v1224 = vpack.c.bf16 %v975, %v975
        %v1225 = vpack.c.bf16 %v976, %v976
        %v1226 = vpack.c.bf16 %v977, %v977
        %v1228 = vsel %vm986, %v1219, 0
        %vm1230 = vcmask 1043456
        %v1232 = vsel %vm1230, %v1223, 0
        %1234 = vmatprep.subr.bf16.mxu0 0
        %1235 = vmatpush1.bf16.msra.mxu0 %v1232
        %1236 = vmatprep.subr.bf16.mxu0 0
        %1237 = vmatpush1.bf16.msra.mxu0 0
        %1238 = vmatprep.subr.bf16.mxu0 0
        %1239 = vmatpush1.bf16.msra.mxu0 0
        %1240 = vmatprep.subr.bf16.mxu0 0
        %1241 = vmatpush1.bf16.msra.mxu0 0
        %1242 = vmatprep.subr.bf16.mxu0 0
        %1243 = vmatpush1.bf16.msra.mxu0 0
        %1244 = vmatprep.subr.bf16.mxu0 0
        %1245 = vmatpush1.bf16.msra.mxu0 0
        %1246 = vmatprep.subr.bf16.mxu0 0
        %1247 = vmatpush1.bf16.msra.mxu0 0
        %1248 = vmatprep.subr.bf16.mxu0 0
        %1249 = vmatpush1.bf16.msra.mxu0 0
        %1250 = vmatprep.subr.bf16.mxu0 0
        %1251 = vmatpush1.bf16.msra.mxu0 0
        %1252 = vmatprep.subr.bf16.mxu0 0
        %1253 = vmatpush1.bf16.msra.mxu0 0
        %1254 = vmatprep.subr.bf16.mxu0 0
        %1255 = vmatpush1.bf16.msra.mxu0 0
        %1256 = vmatprep.subr.bf16.mxu0 0
        %1257 = vmatpush1.bf16.msra.mxu0 0
        %1258 = vmatprep.subr.bf16.mxu0 0
        %1259 = vmatpush1.bf16.msra.mxu0 0
        %1260 = vmatprep.subr.bf16.mxu0 0
        %1261 = vmatpush1.bf16.msra.mxu0 0
        %1262 = vmatprep.subr.bf16.mxu0 0
        %1263 = vmatpush1.bf16.msra.mxu0 0
        %1264 = vmatprep.subr.bf16.mxu0 0
        %1265 = vmatpush1.bf16.msra.mxu0 0
        %1266 = vmatprep.mubr.bf16.mxu0 0
        %1267 = vmatmul.mubr.bf16.gmra.mrb[0].mxu0 %v1228
        %v1268 = vpop.f32.mrb[0].mxu0
        %v1269 = vadd.f32 0.0, %v1268
        %v1270 = vpop.f32.mrb[0].mxu0
        %v1271 = vpop.f32.mrb[0].mxu0
        %v1272 = vpop.f32.mrb[0].mxu0
        %1273 = vdwg.mxu0
        %v1275 = vsel %vm986, %v1220, 0
        %v1278 = vsel %vm1230, %v1224, 0
        %1280 = vmatprep.subr.bf16.mxu0 0
        %1281 = vmatpush1.bf16.msra.mxu0 %v1278
        %1282 = vmatprep.subr.bf16.mxu0 0
        %1283 = vmatpush1.bf16.msra.mxu0 0
        %1284 = vmatprep.subr.bf16.mxu0 0
        %1285 = vmatpush1.bf16.msra.mxu0 0
        %1286 = vmatprep.subr.bf16.mxu0 0
        %1287 = vmatpush1.bf16.msra.mxu0 0
        %1288 = vmatprep.subr.bf16.mxu0 0
        %1289 = vmatpush1.bf16.msra.mxu0 0
        %1290 = vmatprep.subr.bf16.mxu0 0
        %1291 = vmatpush1.bf16.msra.mxu0 0
        %1292 = vmatprep.subr.bf16.mxu0 0
        %1293 = vmatpush1.bf16.msra.mxu0 0
        %1294 = vmatprep.subr.bf16.mxu0 0
        %1295 = vmatpush1.bf16.msra.mxu0 0
        %1296 = vmatprep.subr.bf16.mxu0 0
        %1297 = vmatpush1.bf16.msra.mxu0 0
        %1298 = vmatprep.subr.bf16.mxu0 0
        %1299 = vmatpush1.bf16.msra.mxu0 0
        %1300 = vmatprep.subr.bf16.mxu0 0
        %1301 = vmatpush1.bf16.msra.mxu0 0
        %1302 = vmatprep.subr.bf16.mxu0 0
        %1303 = vmatpush1.bf16.msra.mxu0 0
        %1304 = vmatprep.subr.bf16.mxu0 0
        %1305 = vmatpush1.bf16.msra.mxu0 0
        %1306 = vmatprep.subr.bf16.mxu0 0
        %1307 = vmatpush1.bf16.msra.mxu0 0
        %1308 = vmatprep.subr.bf16.mxu0 0
        %1309 = vmatpush1.bf16.msra.mxu0 0
        %1310 = vmatprep.subr.bf16.mxu0 0
        %1311 = vmatpush1.bf16.msra.mxu0 0
        %1312 = vmatprep.mubr.bf16.mxu0 0
        %1313 = vmatmul.mubr.bf16.gmra.mrb[0].mxu0 %v1275
        %v1314 = vpop.f32.mrb[0].mxu0
        %v1315 = vadd.f32 0.0, %v1314
        %v1316 = vpop.f32.mrb[0].mxu0
        %v1317 = vpop.f32.mrb[0].mxu0
        %v1318 = vpop.f32.mrb[0].mxu0
        %1319 = vdwg.mxu0
        %v1321 = vsel %vm986, %v1221, 0
        %v1324 = vsel %vm1230, %v1225, 0
        %1326 = vmatprep.subr.bf16.mxu0 0
        %1327 = vmatpush1.bf16.msra.mxu0 %v1324
        %1328 = vmatprep.subr.bf16.mxu0 0
        %1329 = vmatpush1.bf16.msra.mxu0 0
        %1330 = vmatprep.subr.bf16.mxu0 0
        %1331 = vmatpush1.bf16.msra.mxu0 0
        %1332 = vmatprep.subr.bf16.mxu0 0
        %1333 = vmatpush1.bf16.msra.mxu0 0
        %1334 = vmatprep.subr.bf16.mxu0 0
        %1335 = vmatpush1.bf16.msra.mxu0 0
        %1336 = vmatprep.subr.bf16.mxu0 0
        %1337 = vmatpush1.bf16.msra.mxu0 0
        %1338 = vmatprep.subr.bf16.mxu0 0
        %1339 = vmatpush1.bf16.msra.mxu0 0
        %1340 = vmatprep.subr.bf16.mxu0 0
        %1341 = vmatpush1.bf16.msra.mxu0 0
        %1342 = vmatprep.subr.bf16.mxu0 0
        %1343 = vmatpush1.bf16.msra.mxu0 0
        %1344 = vmatprep.subr.bf16.mxu0 0
        %1345 = vmatpush1.bf16.msra.mxu0 0
        %1346 = vmatprep.subr.bf16.mxu0 0
        %1347 = vmatpush1.bf16.msra.mxu0 0
        %1348 = vmatprep.subr.bf16.mxu0 0
        %1349 = vmatpush1.bf16.msra.mxu0 0
        %1350 = vmatprep.subr.bf16.mxu0 0
        %1351 = vmatpush1.bf16.msra.mxu0 0
        %1352 = vmatprep.subr.bf16.mxu0 0
        %1353 = vmatpush1.bf16.msra.mxu0 0
        %1354 = vmatprep.subr.bf16.mxu0 0
        %1355 = vmatpush1.bf16.msra.mxu0 0
        %1356 = vmatprep.subr.bf16.mxu0 0
        %1357 = vmatpush1.bf16.msra.mxu0 0
        %1358 = vmatprep.mubr.bf16.mxu0 0
        %1359 = vmatmul.mubr.bf16.gmra.mrb[0].mxu0 %v1321
        %v1360 = vpop.f32.mrb[0].mxu0
        %v1361 = vadd.f32 0.0, %v1360
        %v1362 = vpop.f32.mrb[0].mxu0
        %v1363 = vpop.f32.mrb[0].mxu0
        %v1364 = vpop.f32.mrb[0].mxu0
        %1365 = vdwg.mxu0
        %v1367 = vsel %vm986, %v1222, 0
        %v1370 = vsel %vm1230, %v1226, 0
        %1372 = vmatprep.subr.bf16.mxu0 0
        %1373 = vmatpush1.bf16.msra.mxu0 %v1370
        %1374 = vmatprep.subr.bf16.mxu0 0
        %1375 = vmatpush1.bf16.msra.mxu0 0
        %1376 = vmatprep.subr.bf16.mxu0 0
        %1377 = vmatpush1.bf16.msra.mxu0 0
        %1378 = vmatprep.subr.bf16.mxu0 0
        %1379 = vmatpush1.bf16.msra.mxu0 0
        %1380 = vmatprep.subr.bf16.mxu0 0
        %1381 = vmatpush1.bf16.msra.mxu0 0
        %1382 = vmatprep.subr.bf16.mxu0 0
        %1383 = vmatpush1.bf16.msra.mxu0 0
        %1384 = vmatprep.subr.bf16.mxu0 0
        %1385 = vmatpush1.bf16.msra.mxu0 0
        %1386 = vmatprep.subr.bf16.mxu0 0
        %1387 = vmatpush1.bf16.msra.mxu0 0
        %1388 = vmatprep.subr.bf16.mxu0 0
        %1389 = vmatpush1.bf16.msra.mxu0 0
        %1390 = vmatprep.subr.bf16.mxu0 0
        %1391 = vmatpush1.bf16.msra.mxu0 0
        %1392 = vmatprep.subr.bf16.mxu0 0
        %1393 = vmatpush1.bf16.msra.mxu0 0
        %1394 = vmatprep.subr.bf16.mxu0 0
        %1395 = vmatpush1.bf16.msra.mxu0 0
        %1396 = vmatprep.subr.bf16.mxu0 0
        %1397 = vmatpush1.bf16.msra.mxu0 0
        %1398 = vmatprep.subr.bf16.mxu0 0
        %1399 = vmatpush1.bf16.msra.mxu0 0
        %1400 = vmatprep.subr.bf16.mxu0 0
        %1401 = vmatpush1.bf16.msra.mxu0 0
        %1402 = vmatprep.subr.bf16.mxu0 0
        %1403 = vmatpush1.bf16.msra.mxu0 0
        %1404 = vmatprep.mubr.bf16.mxu0 0
        %1405 = vmatmul.mubr.bf16.gmra.mrb[0].mxu0 %v1367
        %v1406 = vpop.f32.mrb[0].mxu0
        %v1407 = vadd.f32 0.0, %v1406
        %v1408 = vpop.f32.mrb[0].mxu0
        %v1409 = vpop.f32.mrb[0].mxu0
        %v1410 = vpop.f32.mrb[0].mxu0
        %1411 = vdwg.mxu0
        %v1412 = vcombine.low %v1269, %v1361
        %v1413 = vcombine.high %v1269, %v1361
        %v1415 = vunpack.c.l.s4 1983009808
        %v1416 = vunpack.c.0.s8 %v1415
        %v1417 = vlaneseq
        %v1418 = vshrl.u32 %v1417, 7
        %v1419 = vsub.s32 %v1416, %v1418
        %v1420 = vrot.slane %v1412, %v1419
        %v1422 = vunpack.c.l.s4 1983009808
        %v1423 = vunpack.c.0.s8 %v1422
        %v1424 = vlaneseq
        %v1425 = vshrl.u32 %v1424, 7
        %v1426 = vsub.s32 %v1423, %v1425
        %v1427 = vrot.slane %v1413, %v1426
        %v1428 = vcombine.low %v1315, %v1407
        %v1429 = vcombine.high %v1315, %v1407
        %v1431 = vunpack.c.l.s4 1983009808
        %v1432 = vunpack.c.0.s8 %v1431
        %v1433 = vlaneseq
        %v1434 = vshrl.u32 %v1433, 7
        %v1435 = vsub.s32 %v1432, %v1434
        %v1436 = vrot.slane %v1428, %v1435
        %v1438 = vunpack.c.l.s4 1983009808
        %v1439 = vunpack.c.0.s8 %v1438
        %v1440 = vlaneseq
        %v1441 = vshrl.u32 %v1440, 7
        %v1442 = vsub.s32 %v1439, %v1441
        %v1443 = vrot.slane %v1429, %v1442
        %v1444 = vcombine.low %v1420, %v1436
        %v1445 = vcombine.high %v1420, %v1436
        %v1447 = vunpack.c.l.s4 1934713408
        %v1448 = vunpack.c.0.s8 %v1447
        %v1449 = vlaneseq
        %v1450 = vshrl.u32 %v1449, 7
        %v1451 = vsub.s32 %v1448, %v1450
        %v1452 = vrot.slane %v1444, %v1451
        %v1454 = vunpack.c.l.s4 1934713408
        %v1455 = vunpack.c.0.s8 %v1454
        %v1456 = vlaneseq
        %v1457 = vshrl.u32 %v1456, 7
        %v1458 = vsub.s32 %v1455, %v1457
        %v1459 = vrot.slane %v1445, %v1458
        %v1460 = vcombine.low %v1427, %v1443
        %v1461 = vcombine.high %v1427, %v1443
        %v1463 = vunpack.c.l.s4 1934713408
        %v1464 = vunpack.c.0.s8 %v1463
        %v1465 = vlaneseq
        %v1466 = vshrl.u32 %v1465, 7
        %v1467 = vsub.s32 %v1464, %v1466
        %v1468 = vrot.slane %v1460, %v1467
        %v1470 = vunpack.c.l.s4 1934713408
        %v1471 = vunpack.c.0.s8 %v1470
        %v1472 = vlaneseq
        %v1473 = vshrl.u32 %v1472, 7
        %v1474 = vsub.s32 %v1471, %v1473
        %v1475 = vrot.slane %v1461, %v1474
        %v1476 = vcombine.high %v1452, 0.0
        %v1477 = vcombine.high %v1459, 0.0
        %v1478 = vcombine.high %v1468, 0.0
        %v1479 = vcombine.high %v1475, 0.0
        %v1480 = vcombine.low %v1452, %v1459
        %v1482 = vunpack.c.l.s4 1983009808
        %v1483 = vunpack.c.0.s8 %v1482
        %v1484 = vlaneseq
        %v1485 = vshrl.u32 %v1484, 7
        %v1486 = vsub.s32 %v1483, %v1485
        %v1487 = vrot.slane %v1480, %v1486
        %v1488 = vcombine.low %v1476, %v1477
        %v1490 = vunpack.c.l.s4 1983009808
        %v1491 = vunpack.c.0.s8 %v1490
        %v1492 = vlaneseq
        %v1493 = vshrl.u32 %v1492, 7
        %v1494 = vsub.s32 %v1491, %v1493
        %v1495 = vrot.slane %v1488, %v1494
        %v1496 = vcombine.low %v1468, %v1475
        %v1498 = vunpack.c.l.s4 1983009808
        %v1499 = vunpack.c.0.s8 %v1498
        %v1500 = vlaneseq
        %v1501 = vshrl.u32 %v1500, 7
        %v1502 = vsub.s32 %v1499, %v1501
        %v1503 = vrot.slane %v1496, %v1502
        %v1504 = vcombine.low %v1478, %v1479
        %v1506 = vunpack.c.l.s4 1983009808
        %v1507 = vunpack.c.0.s8 %v1506
        %v1508 = vlaneseq
        %v1509 = vshrl.u32 %v1508, 7
        %v1510 = vsub.s32 %v1507, %v1509
        %v1511 = vrot.slane %v1504, %v1510
        %v1512 = vcombine.low %v1487, %v1495
        %v1513 = vcombine.high %v1487, %v1495
        %v1515 = vunpack.c.l.s4 1934713408
        %v1516 = vunpack.c.0.s8 %v1515
        %v1517 = vlaneseq
        %v1518 = vshrl.u32 %v1517, 7
        %v1519 = vsub.s32 %v1516, %v1518
        %v1520 = vrot.slane %v1512, %v1519
        %v1522 = vunpack.c.l.s4 1934713408
        %v1523 = vunpack.c.0.s8 %v1522
        %v1524 = vlaneseq
        %v1525 = vshrl.u32 %v1524, 7
        %v1526 = vsub.s32 %v1523, %v1525
        %v1527 = vrot.slane %v1513, %v1526
        %v1528 = vcombine.low %v1503, %v1511
        %v1529 = vcombine.high %v1503, %v1511
        %v1531 = vunpack.c.l.s4 1934713408
        %v1532 = vunpack.c.0.s8 %v1531
        %v1533 = vlaneseq
        %v1534 = vshrl.u32 %v1533, 7
        %v1535 = vsub.s32 %v1532, %v1534
        %v1536 = vrot.slane %v1528, %v1535
        %v1538 = vunpack.c.l.s4 1934713408
        %v1539 = vunpack.c.0.s8 %v1538
        %v1540 = vlaneseq
        %v1541 = vshrl.u32 %v1540, 7
        %v1542 = vsub.s32 %v1539, %v1541
        %v1543 = vrot.slane %v1529, %v1542
        %v1544 = vcombine.low %v1520, %v1536
        %v1545 = vcombine.high %v1520, %v1536
        %v1546 = vcombine.low %v1527, %v1543
        %v1547 = vcombine.high %v1527, %v1543
        %1549 = vrot.lane.b32.xlu0 %v1545, 8
        %v1550 = vpop.permute.xlu0 %1549
        %1553 = vrot.lane.b32.xlu0 %v1546, 16
        %v1554 = vpop.permute.xlu0 %1553
        %1557 = vrot.lane.b32.xlu0 %v1547, 24
        %v1558 = vpop.permute.xlu0 %1557
        %v1560 = vsel %vm986, %v1544, %v1550
        %vm1561 = vcmask 130048
        %v1562 = vsel %vm1561, %v1560, %v1554
        %vm1563 = vcmask 195584
        %v1564 = vsel %vm1563, %v1562, %v1558
        %v1565 = vpack.c.bf16 %v1564, %v1564
        %v1566 = vld [vmem:[%s5] sm:$0xf]
        %v1567 = vld [vmem:[%s5 + $0x4] sm:$0xf]
        %v1568 = vld [vmem:[%s5 + $0x8] sm:$0xf]
        %v1569 = vld [vmem:[%s5 + $0xc] sm:$0xf]
        %v1570 = vld [vmem:[%s6] sm:$0x1]
        %v1572 = vlaneseq
        %v1573 = vshrl.u32 %v1572, 7
        %v1574 = vsub.s32 0, %v1573
        %v1575 = vrot.slane %v1570, %v1574
        %v1581 = vunpack.c.l.b16 %v1566
        %v1582 = vunpack.c.l.b16 %v1567
        %v1583 = vunpack.c.l.b16 %v1568
        %v1584 = vunpack.c.l.b16 %v1569
        %v1585 = vpack.c.b16 %v1582, %v1581
        %v1586 = vpack.c.b16 %v1584, %v1583
        %v1590 = vsel %vm440, %v1565, 0
        %1592 = vmatprep.subr.bf16.mxu0 0
        %1593 = vmatpush1.bf16.msra.mxu0 %v1585
        %1594 = vmatprep.subr.bf16.mxu0 0
        %1595 = vmatpush1.bf16.msra.mxu0 %v1586
        %1596 = vmatprep.subr.bf16.mxu0 0
        %1597 = vmatpush1.bf16.msra.mxu0 0
        %1598 = vmatprep.subr.bf16.mxu0 0
        %1599 = vmatpush1.bf16.msra.mxu0 0
        %1600 = vmatprep.subr.bf16.mxu0 0
        %1601 = vmatpush1.bf16.msra.mxu0 0
        %1602 = vmatprep.subr.bf16.mxu0 0
        %1603 = vmatpush1.bf16.msra.mxu0 0
        %1604 = vmatprep.subr.bf16.mxu0 0
        %1605 = vmatpush1.bf16.msra.mxu0 0
        %1606 = vmatprep.subr.bf16.mxu0 0
        %1607 = vmatpush1.bf16.msra.mxu0 0
        %1608 = vmatprep.subr.bf16.mxu0 0
        %1609 = vmatpush1.bf16.msra.mxu0 0
        %1610 = vmatprep.subr.bf16.mxu0 0
        %1611 = vmatpush1.bf16.msra.mxu0 0
        %1612 = vmatprep.subr.bf16.mxu0 0
        %1613 = vmatpush1.bf16.msra.mxu0 0
        %1614 = vmatprep.subr.bf16.mxu0 0
        %1615 = vmatpush1.bf16.msra.mxu0 0
        %1616 = vmatprep.subr.bf16.mxu0 0
        %1617 = vmatpush1.bf16.msra.mxu0 0
        %1618 = vmatprep.subr.bf16.mxu0 0
        %1619 = vmatpush1.bf16.msra.mxu0 0
        %1620 = vmatprep.subr.bf16.mxu0 0
        %1621 = vmatpush1.bf16.msra.mxu0 0
        %1622 = vmatprep.subr.bf16.mxu0 0
        %1623 = vmatpush1.bf16.msra.mxu0 0
        %1624 = vmatprep.mubr.bf16.mxu0 0
        %1625 = vmatmul.mubr.bf16.gmra.mrb[0].mxu0 %v1590
        %v1626 = vpop.f32.mrb[0].mxu0
        %v1627 = vadd.f32 %v1575, %v1626
        %v1628 = vpop.f32.mrb[0].mxu0
        %v1629 = vpop.f32.mrb[0].mxu0
        %v1630 = vpop.f32.mrb[0].mxu0
        %1631 = vdwg.mxu0
        %v1632 = vadd.f32 %v437, %v1627
        %v1633 = vld [vmem:[%s7] sm:$0x1]
        %v1634 = vld [vmem:[%s8] sm:$0x1]
        %v1635 = vsel %vm440, %v1632, 0.0
        %1636 = vadd.xlane.f32.xlu0 %v1635
        %v1637 = vpop.xlane.xlu0 %1636
        %v1638 = vmul.f32 %v1637, %v444
        %v1639 = vsub.f32 %v1632, %v1638
        %v1640 = vmul.f32 %v1639, %v1639
        %v1641 = vsel %vm440, %v1640, 0.0
        %1642 = vadd.xlane.f32.xlu0 %v1641
        %v1643 = vpop.xlane.xlu0 %1642
        %v1644 = vmul.f32 %v1643, %v444
        %v1645 = vadd.f32 %v1644, 1e-05
        %v1646 = vrsqrt.pop %v1645
        %v1647 = vmul.f32 %v1639, %v1646
        %v1649 = vlaneseq
        %v1650 = vshrl.u32 %v1649, 7
        %v1651 = vsub.s32 0, %v1650
        %v1652 = vrot.slane %v1633, %v1651
        %v1654 = vmul.f32 %v1647, %v1652
        %v1656 = vlaneseq
        %v1657 = vshrl.u32 %v1656, 7
        %v1658 = vsub.s32 0, %v1657
        %v1659 = vrot.slane %v1634, %v1658
        %v1661 = vadd.f32 %v1654, %v1659
        %v1662 = vpack.c.bf16 %v1661, %v1661
        %v1663 = vld [vmem:[%s9] sm:$0xf]
        %v1664 = vld [vmem:[%s9 + $0x4] sm:$0xf]
        %v1665 = vld [vmem:[%s9 + $0x8] sm:$0xf]
        %v1666 = vld [vmem:[%s9 + $0xc] sm:$0xf]
        %v1667 = vld [vmem:[%s10] sm:$0x1]
        %v1669 = vlaneseq
        %v1670 = vshrl.u32 %v1669, 7
        %v1671 = vsub.s32 0, %v1670
        %v1672 = vrot.slane %v1667, %v1671
        %v1678 = vunpack.c.l.b16 %v1663
        %v1679 = vunpack.c.l.b16 %v1664
        %v1680 = vunpack.c.l.b16 %v1665
        %v1681 = vunpack.c.l.b16 %v1666
        %v1682 = vpack.c.b16 %v1679, %v1678
        %v1683 = vpack.c.b16 %v1681, %v1680
        %v1687 = vsel %vm440, %v1662, 0
        %1689 = vmatprep.subr.bf16.mxu0 0
        %1690 = vmatpush1.bf16.msra.mxu0 %v1682
        %1691 = vmatprep.subr.bf16.mxu0 0
        %1692 = vmatpush1.bf16.msra.mxu0 %v1683
        %1693 = vmatprep.subr.bf16.mxu0 0
        %1694 = vmatpush1.bf16.msra.mxu0 0
        %1695 = vmatprep.subr.bf16.mxu0 0
        %1696 = vmatpush1.bf16.msra.mxu0 0
        %1697 = vmatprep.subr.bf16.mxu0 0
        %1698 = vmatpush1.bf16.msra.mxu0 0
        %1699 = vmatprep.subr.bf16.mxu0 0
        %1700 = vmatpush1.bf16.msra.mxu0 0
        %1701 = vmatprep.subr.bf16.mxu0 0
        %1702 = vmatpush1.bf16.msra.mxu0 0
        %1703 = vmatprep.subr.bf16.mxu0 0
        %1704 = vmatpush1.bf16.msra.mxu0 0
        %1705 = vmatprep.subr.bf16.mxu0 0
        %1706 = vmatpush1.bf16.msra.mxu0 0
        %1707 = vmatprep.subr.bf16.mxu0 0
        %1708 = vmatpush1.bf16.msra.mxu0 0
        %1709 = vmatprep.subr.bf16.mxu0 0
        %1710 = vmatpush1.bf16.msra.mxu0 0
        %1711 = vmatprep.subr.bf16.mxu0 0
        %1712 = vmatpush1.bf16.msra.mxu0 0
        %1713 = vmatprep.subr.bf16.mxu0 0
        %1714 = vmatpush1.bf16.msra.mxu0 0
        %1715 = vmatprep.subr.bf16.mxu0 0
        %1716 = vmatpush1.bf16.msra.mxu0 0
        %1717 = vmatprep.subr.bf16.mxu0 0
        %1718 = vmatpush1.bf16.msra.mxu0 0
        %1719 = vmatprep.subr.bf16.mxu0 0
        %1720 = vmatpush1.bf16.msra.mxu0 0
        %1721 = vmatprep.mubr.bf16.mxu0 0
        %1722 = vmatmul.mubr.bf16.gmra.mrb[0].mxu0 %v1687
        %v1723 = vpop.f32.mrb[0].mxu0
        %v1724 = vadd.f32 %v1672, %v1723
        %v1725 = vpop.f32.mrb[0].mxu0
        %v1726 = vpop.f32.mrb[0].mxu0
        %v1727 = vpop.f32.mrb[0].mxu0
        %1728 = vdwg.mxu0
        %v1729 = vmul.f32 %v1724, 0.5
        %v1730 = vmul.f32 %v1724, 0.70710677
        %v1731 = verf.f32.pop %v1730
        %v1732 = vadd.f32 %v1731, 1.0
        %v1733 = vmul.f32 %v1729, %v1732
        %v1734 = vpack.c.bf16 %v1733, %v1733
        %v1735 = vld [vmem:[%s11] sm:$0xf]
        %v1736 = vld [vmem:[%s11 + $0x4] sm:$0xf]
        %v1737 = vld [vmem:[%s11 + $0x8] sm:$0xf]
        %v1738 = vld [vmem:[%s11 + $0xc] sm:$0xf]
        %v1739 = vld [vmem:[%s11 + $0x10] sm:$0xf]
        %v1740 = vld [vmem:[%s11 + $0x14] sm:$0xf]
        %v1741 = vld [vmem:[%s11 + $0x18] sm:$0xf]
        %v1742 = vld [vmem:[%s11 + $0x1c] sm:$0xf]
        %v1743 = vld [vmem:[%s11 + $0x20] sm:$0xf]
        %v1744 = vld [vmem:[%s11 + $0x24] sm:$0xf]
        %v1745 = vld [vmem:[%s11 + $0x28] sm:$0xf]
        %v1746 = vld [vmem:[%s11 + $0x2c] sm:$0xf]
        %v1747 = vld [vmem:[%s11 + $0x30] sm:$0xf]
        %v1748 = vld [vmem:[%s11 + $0x34] sm:$0xf]
        %v1749 = vld [vmem:[%s11 + $0x38] sm:$0xf]
        %v1750 = vld [vmem:[%s11 + $0x3c] sm:$0xf]
        %v1751 = vld [vmem:[%s12] sm:$0x1]
        %v1753 = vlaneseq
        %v1754 = vshrl.u32 %v1753, 7
        %v1755 = vsub.s32 0, %v1754
        %v1756 = vrot.slane %v1751, %v1755
        %v1774 = vunpack.c.l.b16 %v1735
        %v1775 = vunpack.c.l.b16 %v1736
        %v1776 = vunpack.c.l.b16 %v1737
        %v1777 = vunpack.c.l.b16 %v1738
        %v1778 = vunpack.c.l.b16 %v1739
        %v1779 = vunpack.c.l.b16 %v1740
        %v1780 = vunpack.c.l.b16 %v1741
        %v1781 = vunpack.c.l.b16 %v1742
        %v1782 = vunpack.c.l.b16 %v1743
        %v1783 = vunpack.c.l.b16 %v1744
        %v1784 = vunpack.c.l.b16 %v1745
        %v1785 = vunpack.c.l.b16 %v1746
        %v1786 = vunpack.c.l.b16 %v1747
        %v1787 = vunpack.c.l.b16 %v1748
        %v1788 = vunpack.c.l.b16 %v1749
        %v1789 = vunpack.c.l.b16 %v1750
        %v1790 = vpack.c.b16 %v1775, %v1774
        %v1791 = vpack.c.b16 %v1777, %v1776
        %v1792 = vpack.c.b16 %v1779, %v1778
        %v1793 = vpack.c.b16 %v1781, %v1780
        %v1794 = vpack.c.b16 %v1783, %v1782
        %v1795 = vpack.c.b16 %v1785, %v1784
        %v1796 = vpack.c.b16 %v1787, %v1786
        %v1797 = vpack.c.b16 %v1789, %v1788
        %1806 = vmatprep.subr.bf16.mxu0 0
        %1807 = vmatpush1.bf16.msra.mxu0 %v1790
        %1808 = vmatprep.subr.bf16.mxu0 0
        %1809 = vmatpush1.bf16.msra.mxu0 %v1791
        %1810 = vmatprep.subr.bf16.mxu0 0
        %1811 = vmatpush1.bf16.msra.mxu0 %v1792
        %1812 = vmatprep.subr.bf16.mxu0 0
        %1813 = vmatpush1.bf16.msra.mxu0 %v1793
        %1814 = vmatprep.subr.bf16.mxu0 0
        %1815 = vmatpush1.bf16.msra.mxu0 %v1794
        %1816 = vmatprep.subr.bf16.mxu0 0
        %1817 = vmatpush1.bf16.msra.mxu0 %v1795
        %1818 = vmatprep.subr.bf16.mxu0 0
        %1819 = vmatpush1.bf16.msra.mxu0 %v1796
        %1820 = vmatprep.subr.bf16.mxu0 0
        %1821 = vmatpush1.bf16.msra.mxu0 %v1797
        %1822 = vmatprep.subr.bf16.mxu0 0
        %1823 = vmatpush1.bf16.msra.mxu0 0
        %1824 = vmatprep.subr.bf16.mxu0 0
        %1825 = vmatpush1.bf16.msra.mxu0 0
        %1826 = vmatprep.subr.bf16.mxu0 0
        %1827 = vmatpush1.bf16.msra.mxu0 0
        %1828 = vmatprep.subr.bf16.mxu0 0
        %1829 = vmatpush1.bf16.msra.mxu0 0
        %1830 = vmatprep.subr.bf16.mxu0 0
        %1831 = vmatpush1.bf16.msra.mxu0 0
        %1832 = vmatprep.subr.bf16.mxu0 0
        %1833 = vmatpush1.bf16.msra.mxu0 0
        %1834 = vmatprep.subr.bf16.mxu0 0
        %1835 = vmatpush1.bf16.msra.mxu0 0
        %1836 = vmatprep.subr.bf16.mxu0 0
        %1837 = vmatpush1.bf16.msra.mxu0 0
        %1838 = vmatprep.mubr.bf16.mxu0 0
        %1839 = vmatmul.mubr.bf16.gmra.mrb[0].mxu0 %v1734
        %v1840 = vpop.f32.mrb[0].mxu0
        %v1841 = vadd.f32 %v1756, %v1840
        %v1842 = vpop.f32.mrb[0].mxu0
        %v1843 = vpop.f32.mrb[0].mxu0
        %v1844 = vpop.f32.mrb[0].mxu0
        %1845 = vdwg.mxu0
        %v1846 = vadd.f32 %v1632, %v1841
        %1847 = vst.msk [vmem:[%s431] sm:$0xff] %vm440, %v1846
        %s1848 = sand.u32 %s313, 1
        %s1849 = scalar_lea.sflag [#allocation3], %s1848
        %s1850 = sand.u32 %s313, 1
        %s1851 = smul.addr %s1850, 8
        %s1852 = scalar_lea.vmem [#allocation2], %s1851
        // Predicated region
        $region73: #{vit_block_forward.1} parent=71 // pred_check
          %p1853 = pneg %p323
        $region74: #{vit_block_forward.1} parent=71 // pred_check_branch
          %1855 = sbr.rel (%p1853) target = $region76
        $region75: #{vit_block_forward.1} parent=71 // pred_region
          %s1857 = ssub.s32 128, 128
          %1858 = vsyncadd %s1849, %s1857
          %s1859 = smul.addr %s27, 128
          %s1860 = scalar_lea.hbm %s13, %s1859
          %s1862 = sshll.u32 %s1852, 4
          %s1863 = int_to_ptr.vmem [resolvable:$true] %s1862
          %1865 = dma.vmem_to_hbm [thread:$0]  %s1863, 128, %s1860, %s1849
        $region76: #{vit_block_forward.1} parent=71 // pred_fallthru
          _
      $region72: #{vit_block_forward.1} parent=5 // pred_fallthru
        _
      %p1866 = scmp.le.s32.totalorder 2, %s22
      // Predicated region
      $region77: #{vit_block_forward.1} parent=5 // pred_check
        %p1867 = pneg %p1866
      $region78: #{vit_block_forward.1} parent=5 // pred_check_branch
        %1869 = sbr.rel (%p1867) target = $region80
      $region79: #{vit_block_forward.1} parent=5 // pred_region
        %s1870 = ssub.s32 %s22, 2
        // Predicated region
        $region81: #{vit_block_forward.1} parent=79 // pred_check
          %p1871 = pneg %p329
        $region82: #{vit_block_forward.1} parent=79 // pred_check_branch
          %1873 = sbr.rel (%p1871) target = $region84
        $region83: #{vit_block_forward.1} parent=79 // pred_region
          %s1874 = sand.u32 %s314, 1
          %s1875 = scalar_lea.sflag [#allocation3], %s1874
          %s1876 = sand.u32 %s314, 1
          %s1877 = smul.addr %s1876, 8
          %s1878 = scalar_lea.vmem [#allocation2], %s1877
          %1879 = dma.done %s1875, 128
        $region84: #{vit_block_forward.1} parent=79 // pred_fallthru
          _
      $region80: #{vit_block_forward.1} parent=5 // pred_fallthru
        _
    $region6: #{vit_block_forward.1} parent=1 // loop_footer
      %s26 = sadd.s32 1, %s22
    $region7: #{vit_block_forward.1} parent=1 // loop_footer_branch
      %21 = sbr.rel target = $region3
    $region8: #{vit_block_forward.1} parent=1 // loop_exit
      _
    %1880 = vsyncpa [#allocation3], 1
    %s1881 = scalar_lea.sflag [#allocation3], 1
    %1882 = vsyncpa %s1881, 1

</llo_original>
